<compile_context>
chip_gen: v5e
topology: v5e:2x2
jax: 0.10.0
libtpu: 0.0.40
codegen_flags: <defaults>
</compile_context>

<pallas_src>
import functools

import jax
import jax.numpy as jnp
from jax.experimental import pallas as pl
from jax.experimental.pallas import tpu as pltpu


def _mha_flash_kernel(xq_ref, xkv_ref, wq_ref, wkv_ref, wo_ref, o_ref,
                      q_sc, m_sc, l_sc, acc_sc, *,
                      n_heads, head_size, block_q, block_k, compute_dtype):
    """One (batch, q-block, kv-block) grid step of causal multi-head attention.

    Scratch (persists across the kv sweep of one query block):
      q_sc   (tq, H*hs)  projected, pre-scaled queries (compute_dtype)
      m_sc   (tq, H)     per-head running row-max (f32)
      l_sc   (tq, H)     per-head running softmax denominator (f32)
      acc_sc (tq, H*hs)  per-head running P@V accumulator, head-concat layout (f32)
    """
    qi = pl.program_id(1)
    ki = pl.program_id(2)
    H, hs = n_heads, head_size
    N = H * hs

    @pl.when(ki == 0)
    def _init():
        # Q projection for this query block; 1/sqrt(C) already folded into wq_ref.
        xq = xq_ref[0].astype(compute_dtype)
        q_sc[...] = jnp.dot(xq, wq_ref[...],
                            preferred_element_type=jnp.float32).astype(compute_dtype)
        m_sc[...] = jnp.full_like(m_sc, -jnp.inf)
        l_sc[...] = jnp.zeros_like(l_sc)
        acc_sc[...] = jnp.zeros_like(acc_sc)

    @pl.when(ki <= qi)  # causal block skipping: blocks above the diagonal do nothing
    def _step():
        # Fused K|V projection for this kv block: one (tk, C) x (C, 2N) matmul.
        xkv = xkv_ref[0].astype(compute_dtype)
        kv = jnp.dot(xkv, wkv_ref[...], preferred_element_type=jnp.float32)  # (tk, 2N)

        # Global causal mask for this (qi, ki) block pair — hoisted out of the head loop.
        row = jax.lax.broadcasted_iota(jnp.int32, (block_q, block_k), 0) + qi * block_q
        col = jax.lax.broadcasted_iota(jnp.int32, (block_q, block_k), 1) + ki * block_k
        causal = col <= row

        for h in range(H):                       # short static unroll over heads
            sl = slice(h * hs, (h + 1) * hs)
            q_h = q_sc[:, sl]                                        # (tq, hs)
            k_h = kv[:, sl].astype(compute_dtype)                    # (tk, hs)
            v_h = kv[:, N + h * hs:N + (h + 1) * hs].astype(compute_dtype)

            # Q @ K^T via contraction on the last axes (no explicit transpose of K).
            s = jax.lax.dot_general(q_h, k_h, (((1,), (1,)), ((), ())),
                                    preferred_element_type=jnp.float32)  # (tq, tk) f32
            s = jnp.where(causal, s, -jnp.inf)

            # Online (flash) softmax update — all elementwise math in f32.
            m_prev = m_sc[:, h:h + 1]
            m_new = jnp.maximum(m_prev, jnp.max(s, axis=-1, keepdims=True))
            alpha = jnp.exp(m_prev - m_new)
            p = jnp.exp(s - m_new)
            l_sc[:, h:h + 1] = alpha * l_sc[:, h:h + 1] + jnp.sum(p, axis=-1, keepdims=True)
            acc_sc[:, sl] = alpha * acc_sc[:, sl] + jnp.dot(
                p.astype(compute_dtype), v_h, preferred_element_type=jnp.float32)
            m_sc[:, h:h + 1] = m_new

    @pl.when(ki == qi)  # the diagonal block is the last contributing kv block
    def _finalize():
        for h in range(H):
            sl = slice(h * hs, (h + 1) * hs)
            denom = l_sc[:, h:h + 1]
            inv = pl.reciprocal(denom, approx=True)      # EUP vrcp
            inv = inv * (2.0 - denom * inv)              # one Newton step -> ~f32 accuracy
            acc_sc[:, sl] = acc_sc[:, sl] * inv
        # TODO(synk): nn.Dropout(0.2) on the attention weights is stochastic in training
        # mode; implemented as identity (eval-mode semantics) here.
        # Single fused output projection: (tq, H*hs) x (H*hs, C).
        out = jnp.dot(acc_sc[...].astype(compute_dtype), wo_ref[...],
                      preferred_element_type=jnp.float32)
        o_ref[0] = out.astype(o_ref.dtype)


def _pick_block(T):
    """Largest 128-multiple tile dividing T (capped at 256); whole T for toy sizes."""
    for cand in (256, 128):
        if T % cand == 0:
            return cand
    return T


def multihead_attention(x, wq, wk, wv, wo, *, compute_dtype=jnp.float32, block_q=None):
    """
    x  : (B, T, C)  float32
    wq, wk, wv : (H, C, hs)  per-head projection weights (Q_h = x @ wq[h])
    wo : (H, hs, C)          per-head slices of WO^T (concatenated along axis 0)
    compute_dtype : dtype of the MXU operands. bf16 is recommended on ALL TPU
                    generations (v5e/v6e/v7x MXUs are bf16-native); accumulation and
                    all softmax / elementwise math stay in f32 regardless.
    returns (B, T, C) float32
    """
    B, T, C = x.shape
    H, _, hs = wq.shape
    N = H * hs
    # NOTE: scale is 1/sqrt(emb_size C), NOT 1/sqrt(head_size) — per the PyTorch reference.
    inv_scale = 1.0 / (float(C) ** 0.5)

    tq = block_q if block_q is not None else _pick_block(T)
    assert T % tq == 0, "block_q must divide T"
    tk = tq
    num_q = T // tq
    num_kv = T // tk

    # Weight layout plumbing in the wrapper (not compute):
    #   wq_f[:, h*hs:(h+1)*hs] = wq[h] * inv_scale   (scale folded into WQ)
    #   wkv_f = [wk_f | wv_f]  fused K/V weights, one matmul per kv block
    #   wo_f[h*hs:(h+1)*hs, :] = wo[h]
    wq_f = (jnp.transpose(wq, (1, 0, 2)).reshape(C, N) * inv_scale).astype(compute_dtype)
    wk_f = jnp.transpose(wk, (1, 0, 2)).reshape(C, N)
    wv_f = jnp.transpose(wv, (1, 0, 2)).reshape(C, N)
    wkv_f = jnp.concatenate([wk_f, wv_f], axis=1).astype(compute_dtype)   # (C, 2N)
    wo_f = wo.reshape(N, C).astype(compute_dtype)

    kernel = functools.partial(
        _mha_flash_kernel, n_heads=H, head_size=hs,
        block_q=tq, block_k=tk, compute_dtype=compute_dtype)

    # Advisory cost estimate so XLA schedules surrounding ops sensibly.
    cd_bytes = jnp.dtype(compute_dtype).itemsize
    flops = (2 * B * T * C * N              # Q projection
             + 2 * B * T * C * 2 * N        # K/V projection
             + 2 * B * H * T * T * hs       # QK^T + P@V (causal ~halves each)
             + 2 * B * T * N * C)           # output projection
    transcendentals = B * H * T * T // 2
    bytes_accessed = (2 * x.size * x.dtype.itemsize + B * T * C * 4
                      + (wq_f.size + wkv_f.size + wo_f.size) * cd_bytes)

    # Explicit VMEM budget (double-buffered x/out blocks + weights + scratch + slack);
    # clamped so it stays safe on v7x's 64 MiB physical VMEM.
    block_bytes = tq * C * 4
    weight_bytes = (wq_f.size + wkv_f.size + wo_f.size) * cd_bytes
    scratch_bytes = tq * N * cd_bytes + 2 * tq * 128 * 4 + tq * N * 4
    est = 2 * (3 * block_bytes) + 2 * weight_bytes + scratch_bytes
    vmem_limit = int(min(max(4 * est, 32 * 1024 * 1024), 100 * 1024 * 1024))

    grid_spec = pltpu.PrefetchScalarGridSpec(
        num_scalar_prefetch=0,
        grid=(B, num_q, num_kv),
        in_specs=[
            # query rows: resident across the whole kv sweep of a query block
            pl.BlockSpec((1, tq, C), lambda b, qi, ki: (b, qi, 0)),
            # kv rows: clamp to the diagonal block so skipped (ki > qi) steps fetch nothing new
            pl.BlockSpec((1, tk, C), lambda b, qi, ki: (b, jnp.minimum(ki, qi), 0)),
            # invariant weights (for very large C add pipeline_mode=pl.Buffered(1) here)
            pl.BlockSpec((C, N), lambda b, qi, ki: (0, 0)),        # wq (pre-scaled)
            pl.BlockSpec((C, 2 * N), lambda b, qi, ki: (0, 0)),    # wk|wv fused
            pl.BlockSpec((N, C), lambda b, qi, ki: (0, 0)),        # wo
        ],
        out_specs=pl.BlockSpec((1, tq, C), lambda b, qi, ki: (b, qi, 0)),
        scratch_shapes=[
            pltpu.VMEM((tq, N), compute_dtype),    # q
            pltpu.VMEM((tq, H), jnp.float32),      # m (per-head running max)
            pltpu.VMEM((tq, H), jnp.float32),      # l (per-head running denom)
            pltpu.VMEM((tq, N), jnp.float32),      # acc (head-concat P@V)
        ],
    )

    return pl.pallas_call(
        kernel,
        out_shape=jax.ShapeDtypeStruct((B, T, C), jnp.float32),
        grid_spec=grid_spec,
        compiler_params=pltpu.CompilerParams(
            dimension_semantics=("parallel", "parallel", "arbitrary"),
            vmem_limit_bytes=vmem_limit,
        ),
        cost_estimate=pl.CostEstimate(flops=flops,
                                      transcendentals=transcendentals,
                                      bytes_accessed=bytes_accessed),
    )(x, x, wq_f, wkv_f, wo_f)


def _reference(x, wq, wk, wv, wo):
    """Pure-JAX reference mirroring the PyTorch forward (eval-mode dropout)."""
    B, T, C = x.shape
    H, _, hs = wq.shape
    mask = jnp.tril(jnp.ones((T, T), dtype=bool))
    outs = []
    for h in range(H):
        q = x @ wq[h]
        k = x @ wk[h]
        v = x @ wv[h]
        w = (q @ jnp.swapaxes(k, -2, -1)) / (C ** 0.5)
        w = jnp.where(mask, w, -jnp.inf)
        w = jax.nn.softmax(w, axis=-1)
        outs.append(w @ v)
    cat = jnp.concatenate(outs, axis=-1)           # (B, T, H*hs)
    wo_full = wo.reshape(H * hs, C)                # (H*hs, C)
    return cat @ wo_full


if __name__ == "__main__":
    # Shapes consistent with the module:
    #   emb_size C = 32, head_size hs = 8, head_cnt H = 4, batch B = 2, seq T = 8
    B, T, C = 2, 8, 32
    H, hs = 4, 8

    key = jax.random.PRNGKey(0)
    kx, kq, kk, kv, ko = jax.random.split(key, 5)

    x = jax.random.normal(kx, (B, T, C), dtype=jnp.float32)
    wq = jax.random.normal(kq, (H, C, hs), dtype=jnp.float32) * 0.1
    wk = jax.random.normal(kk, (H, C, hs), dtype=jnp.float32) * 0.1
    wv = jax.random.normal(kv, (H, C, hs), dtype=jnp.float32) * 0.1
    wo = jax.random.normal(ko, (H, hs, C), dtype=jnp.float32) * 0.1

    ref = _reference(x, wq, wk, wv, wo)

    # Full-precision path (exact semantics check).
    out_f32 = jax.block_until_ready(
        multihead_attention(x, wq, wk, wv, wo, compute_dtype=jnp.float32))
    assert out_f32.shape == (B, T, C)
    assert jnp.allclose(out_f32, ref, atol=1e-4, rtol=1e-4), "f32 mismatch vs reference"

    # bf16 MXU-operand fast path (recommended on v5e/v6e/v7x; f32 accumulation + softmax).
    out_bf16 = jax.block_until_ready(
        multihead_attention(x, wq, wk, wv, wo, compute_dtype=jnp.bfloat16))
    assert jnp.allclose(out_bf16, ref, atol=3e-2, rtol=3e-2), "bf16 mismatch vs reference"

    # Multi-block flash path (online softmax across kv blocks + causal block skipping).
    T2 = 256
    x2 = jax.random.normal(jax.random.PRNGKey(1), (B, T2, C), dtype=jnp.float32)
    ref2 = _reference(x2, wq, wk, wv, wo)
    out2 = jax.block_until_ready(
        multihead_attention(x2, wq, wk, wv, wo, compute_dtype=jnp.float32, block_q=128))
    assert jnp.allclose(out2, ref2, atol=1e-4, rtol=1e-4), "multi-block mismatch vs reference"

    print("KERNEL_OK")
</pallas_src>

<mosaic_0001>
module attributes {stable_mosaic.version = 11 : i64} {
  func.func @_mha_flash_kernel(%arg0: i32, %arg1: i32, %arg2: i32, %arg3: memref<1x8x32xf32, #tpu.memory_space<vmem>>, %arg4: memref<1x8x32xf32, #tpu.memory_space<vmem>>, %arg5: memref<32x32xf32, #tpu.memory_space<vmem>>, %arg6: memref<32x64xf32, #tpu.memory_space<vmem>>, %arg7: memref<32x32xf32, #tpu.memory_space<vmem>>, %arg8: memref<1x8x32xf32, #tpu.memory_space<vmem>>, %arg9: memref<8x32xf32, #tpu.memory_space<vmem>>, %arg10: memref<8x4xf32, #tpu.memory_space<vmem>>, %arg11: memref<8x4xf32, #tpu.memory_space<vmem>>, %arg12: memref<8x32xf32, #tpu.memory_space<vmem>>) attributes {dimension_semantics = [#tpu.dimension_semantics<parallel>, #tpu.dimension_semantics<parallel>, #tpu.dimension_semantics<arbitrary>], iteration_bounds = array<i64: 2, 1, 1>, scalar_prefetch = 0 : i64, scratch_operands = 4 : i64, tpu.core_type = #tpu.core_type<tc>, window_params = [{transform_indices = @transform_0, window_bounds = array<i64: 1, 8, 32>}, {transform_indices = @transform_1, window_bounds = array<i64: 1, 8, 32>}, {pipeline_mode = #tpu.pipeline_mode<synchronous>, transform_indices = @transform_2, window_bounds = array<i64: 32, 32>}, {pipeline_mode = #tpu.pipeline_mode<synchronous>, transform_indices = @transform_3, window_bounds = array<i64: 32, 64>}, {pipeline_mode = #tpu.pipeline_mode<synchronous>, transform_indices = @transform_4, window_bounds = array<i64: 32, 32>}, {transform_indices = @transform_5, window_bounds = array<i64: 1, 8, 32>}]} {
    %c0_i32 = arith.constant 0 : i32
    %0 = arith.cmpi eq, %arg2, %c0_i32 : i32
    %1 = arith.extui %0 : i1 to i32
    %c0_i32_0 = arith.constant 0 : i32
    %2 = arith.cmpi ne, %1, %c0_i32_0 : i32
    scf.if %2 {
      %c0 = arith.constant 0 : index
      %c0_3 = arith.constant 0 : index
      %c0_4 = arith.constant 0 : index
      %9 = vector.load %arg3[%c0, %c0_3, %c0_4] : memref<1x8x32xf32, #tpu.memory_space<vmem>>, vector<1x8x32xf32>
      %10 = vector.shape_cast %9 : vector<1x8x32xf32> to vector<8x32xf32>
      %c0_5 = arith.constant 0 : index
      %c0_6 = arith.constant 0 : index
      %11 = vector.load %arg5[%c0_5, %c0_6] : memref<32x32xf32, #tpu.memory_space<vmem>>, vector<32x32xf32>
      %cst = arith.constant dense<0.000000e+00> : vector<8x32xf32>
      %12 = tpu.matmul %10, %11, %cst {dimension_numbers = #tpu.dot_dimension_numbers<[1], [0], [0], [1], [0, 0, 1, 1], [], []>} : vector<8x32xf32>, vector<32x32xf32>, vector<8x32xf32> -> vector<8x32xf32>
      %c0_7 = arith.constant 0 : index
      %c0_8 = arith.constant 0 : index
      %13 = vector.load %arg9[%c0_7, %c0_8] : memref<8x32xf32, #tpu.memory_space<vmem>>, vector<8x32xf32>
      tpu.vector_store %arg9[%c0_7, %c0_8], %12 {strides = array<i32>} : memref<8x32xf32, #tpu.memory_space<vmem>>, vector<8x32xf32>,
      %cst_9 = arith.constant 0xFF800000 : f32
      %14 = vector.broadcast %cst_9 : f32 to vector<8x4xf32>
      %c0_10 = arith.constant 0 : index
      %c0_11 = arith.constant 0 : index
      %15 = vector.load %arg10[%c0_10, %c0_11] : memref<8x4xf32, #tpu.memory_space<vmem>>, vector<8x4xf32>
      tpu.vector_store %arg10[%c0_10, %c0_11], %14 {strides = array<i32>} : memref<8x4xf32, #tpu.memory_space<vmem>>, vector<8x4xf32>,
      %cst_12 = arith.constant 0.000000e+00 : f32
      %16 = vector.broadcast %cst_12 : f32 to vector<8x4xf32>
      %c0_13 = arith.constant 0 : index
      %c0_14 = arith.constant 0 : index
      %17 = vector.load %arg11[%c0_13, %c0_14] : memref<8x4xf32, #tpu.memory_space<vmem>>, vector<8x4xf32>
      tpu.vector_store %arg11[%c0_13, %c0_14], %16 {strides = array<i32>} : memref<8x4xf32, #tpu.memory_space<vmem>>, vector<8x4xf32>,
      %cst_15 = arith.constant 0.000000e+00 : f32
      %18 = vector.broadcast %cst_15 : f32 to vector<8x32xf32>
      %c0_16 = arith.constant 0 : index
      %c0_17 = arith.constant 0 : index
      %19 = vector.load %arg12[%c0_16, %c0_17] : memref<8x32xf32, #tpu.memory_space<vmem>>, vector<8x32xf32>
      tpu.vector_store %arg12[%c0_16, %c0_17], %18 {strides = array<i32>} : memref<8x32xf32, #tpu.memory_space<vmem>>, vector<8x32xf32>,
    } else {
    }
    %3 = arith.cmpi sle, %arg2, %arg1 : i32
    %4 = arith.extui %3 : i1 to i32
    %c0_i32_1 = arith.constant 0 : i32
    %5 = arith.cmpi ne, %4, %c0_i32_1 : i32
    scf.if %5 {
      %c0 = arith.constant 0 : index
      %c0_3 = arith.constant 0 : index
      %c0_4 = arith.constant 0 : index
      %9 = vector.load %arg4[%c0, %c0_3, %c0_4] : memref<1x8x32xf32, #tpu.memory_space<vmem>>, vector<1x8x32xf32>
      %10 = vector.shape_cast %9 : vector<1x8x32xf32> to vector<8x32xf32>
      %c0_5 = arith.constant 0 : index
      %c0_6 = arith.constant 0 : index
      %11 = vector.load %arg6[%c0_5, %c0_6] : memref<32x64xf32, #tpu.memory_space<vmem>>, vector<32x64xf32>
      %cst = arith.constant dense<0.000000e+00> : vector<8x64xf32>
      %12 = tpu.matmul %10, %11, %cst {dimension_numbers = #tpu.dot_dimension_numbers<[1], [0], [0], [1], [0, 0, 1, 1], [], []>} : vector<8x32xf32>, vector<32x64xf32>, vector<8x64xf32> -> vector<8x64xf32>
      %13 = tpu.iota {dimensions = array<i32: 0>} : vector<8x8xi32>
      %c8_i32 = arith.constant 8 : i32
      %14 = arith.muli %arg1, %c8_i32 : i32
      %15 = vector.broadcast %14 : i32 to vector<8x8xi32>
      %16 = arith.addi %13, %15 : vector<8x8xi32>
      %17 = tpu.iota {dimensions = array<i32: 1>} : vector<8x8xi32>
      %c8_i32_7 = arith.constant 8 : i32
      %18 = arith.muli %arg2, %c8_i32_7 : i32
      %19 = vector.broadcast %18 : i32 to vector<8x8xi32>
      %20 = arith.addi %17, %19 : vector<8x8xi32>
      %21 = arith.cmpi sle, %20, %16 : vector<8x8xi32>
      %c0_8 = arith.constant 0 : index
      %c0_9 = arith.constant 0 : index
      %22 = vector.load %arg9[%c0_8, %c0_9] : memref<8x32xf32, #tpu.memory_space<vmem>>, vector<8x8xf32>
      %23 = vector.extract_strided_slice %12 {offsets = [0, 0], sizes = [8, 8], strides = [1, 1]} : vector<8x64xf32> to vector<8x8xf32>
      %24 = vector.extract_strided_slice %12 {offsets = [0, 32], sizes = [8, 8], strides = [1, 1]} : vector<8x64xf32> to vector<8x8xf32>
      %cst_10 = arith.constant dense<0.000000e+00> : vector<8x8xf32>
      %25 = tpu.matmul %22, %23, %cst_10 {dimension_numbers = #tpu.dot_dimension_numbers<[1], [1], [0], [0], [0, 0, 1, 0], [], []>} : vector<8x8xf32>, vector<8x8xf32>, vector<8x8xf32> -> vector<8x8xf32>
      %cst_11 = arith.constant 0xFF800000 : f32
      %26 = vector.broadcast %cst_11 : f32 to vector<8x8xf32>
      %27 = arith.select %21, %25, %26 : vector<8x8xi1>, vector<8x8xf32>
      %c0_12 = arith.constant 0 : index
      %c0_13 = arith.constant 0 : index
      %28 = vector.load %arg10[%c0_12, %c0_13] : memref<8x4xf32, #tpu.memory_space<vmem>>, vector<8x1xf32>
      %cst_14 = arith.constant dense<0xFF800000> : vector<8xf32>
      %29 = vector.multi_reduction <maximumf>, %27, %cst_14 [1] : vector<8x8xf32> to vector<8xf32>
      %30 = vector.shape_cast %29 : vector<8xf32> to vector<8x1xf32>
      %31 = arith.maximumf %28, %30 : vector<8x1xf32>
      %32 = arith.subf %28, %31 : vector<8x1xf32>
      %33 = math.exp %32 : vector<8x1xf32>
      %34 = vector.broadcast %31 : vector<8x1xf32> to vector<8x8xf32>
      %35 = arith.subf %27, %34 : vector<8x8xf32>
      %36 = math.exp %35 : vector<8x8xf32>
      %c0_15 = arith.constant 0 : index
      %c0_16 = arith.constant 0 : index
      %37 = vector.load %arg11[%c0_15, %c0_16] : memref<8x4xf32, #tpu.memory_space<vmem>>, vector<8x1xf32>
      %38 = arith.mulf %33, %37 : vector<8x1xf32>
      %cst_17 = arith.constant dense<0.000000e+00> : vector<8xf32>
      %39 = vector.multi_reduction <add>, %36, %cst_17 [1] : vector<8x8xf32> to vector<8xf32>
      %40 = vector.shape_cast %39 : vector<8xf32> to vector<8x1xf32>
      %41 = arith.addf %38, %40 : vector<8x1xf32>
      %c0_18 = arith.constant 0 : index
      %c0_19 = arith.constant 0 : index
      %42 = vector.load %arg11[%c0_18, %c0_19] : memref<8x4xf32, #tpu.memory_space<vmem>>, vector<8x1xf32>
      tpu.vector_store %arg11[%c0_18, %c0_19], %41 {strides = array<i32>} : memref<8x4xf32, #tpu.memory_space<vmem>>, vector<8x1xf32>,
      %c0_20 = arith.constant 0 : index
      %c0_21 = arith.constant 0 : index
      %43 = vector.load %arg12[%c0_20, %c0_21] : memref<8x32xf32, #tpu.memory_space<vmem>>, vector<8x8xf32>
      %44 = vector.broadcast %33 : vector<8x1xf32> to vector<8x8xf32>
      %45 = arith.mulf %44, %43 : vector<8x8xf32>
      %cst_22 = arith.constant dense<0.000000e+00> : vector<8x8xf32>
      %46 = tpu.matmul %36, %24, %cst_22 {dimension_numbers = #tpu.dot_dimension_numbers<[1], [0], [0], [1], [0, 0, 1, 1], [], []>} : vector<8x8xf32>, vector<8x8xf32>, vector<8x8xf32> -> vector<8x8xf32>
      %47 = arith.addf %45, %46 : vector<8x8xf32>
      %c0_23 = arith.constant 0 : index
      %c0_24 = arith.constant 0 : index
      %48 = vector.load %arg12[%c0_23, %c0_24] : memref<8x32xf32, #tpu.memory_space<vmem>>, vector<8x8xf32>
      tpu.vector_store %arg12[%c0_23, %c0_24], %47 {strides = array<i32>} : memref<8x32xf32, #tpu.memory_space<vmem>>, vector<8x8xf32>,
      %c0_25 = arith.constant 0 : index
      %c0_26 = arith.constant 0 : index
      %49 = vector.load %arg10[%c0_25, %c0_26] : memref<8x4xf32, #tpu.memory_space<vmem>>, vector<8x1xf32>
      tpu.vector_store %arg10[%c0_25, %c0_26], %31 {strides = array<i32>} : memref<8x4xf32, #tpu.memory_space<vmem>>, vector<8x1xf32>,
      %c0_27 = arith.constant 0 : index
      %c8 = arith.constant 8 : index
      %50 = vector.load %arg9[%c0_27, %c8] : memref<8x32xf32, #tpu.memory_space<vmem>>, vector<8x8xf32>
      %51 = vector.extract_strided_slice %12 {offsets = [0, 8], sizes = [8, 8], strides = [1, 1]} : vector<8x64xf32> to vector<8x8xf32>
      %52 = vector.extract_strided_slice %12 {offsets = [0, 40], sizes = [8, 8], strides = [1, 1]} : vector<8x64xf32> to vector<8x8xf32>
      %cst_28 = arith.constant dense<0.000000e+00> : vector<8x8xf32>
      %53 = tpu.matmul %50, %51, %cst_28 {dimension_numbers = #tpu.dot_dimension_numbers<[1], [1], [0], [0], [0, 0, 1, 0], [], []>} : vector<8x8xf32>, vector<8x8xf32>, vector<8x8xf32> -> vector<8x8xf32>
      %cst_29 = arith.constant 0xFF800000 : f32
      %54 = vector.broadcast %cst_29 : f32 to vector<8x8xf32>
      %55 = arith.select %21, %53, %54 : vector<8x8xi1>, vector<8x8xf32>
      %c0_30 = arith.constant 0 : index
      %c1 = arith.constant 1 : index
      %56 = vector.load %arg10[%c0_30, %c1] : memref<8x4xf32, #tpu.memory_space<vmem>>, vector<8x1xf32>
      %cst_31 = arith.constant dense<0xFF800000> : vector<8xf32>
      %57 = vector.multi_reduction <maximumf>, %55, %cst_31 [1] : vector<8x8xf32> to vector<8xf32>
      %58 = vector.shape_cast %57 : vector<8xf32> to vector<8x1xf32>
      %59 = arith.maximumf %56, %58 : vector<8x1xf32>
      %60 = arith.subf %56, %59 : vector<8x1xf32>
      %61 = math.exp %60 : vector<8x1xf32>
      %62 = vector.broadcast %59 : vector<8x1xf32> to vector<8x8xf32>
      %63 = arith.subf %55, %62 : vector<8x8xf32>
      %64 = math.exp %63 : vector<8x8xf32>
      %c0_32 = arith.constant 0 : index
      %c1_33 = arith.constant 1 : index
      %65 = vector.load %arg11[%c0_32, %c1_33] : memref<8x4xf32, #tpu.memory_space<vmem>>, vector<8x1xf32>
      %66 = arith.mulf %61, %65 : vector<8x1xf32>
      %cst_34 = arith.constant dense<0.000000e+00> : vector<8xf32>
      %67 = vector.multi_reduction <add>, %64, %cst_34 [1] : vector<8x8xf32> to vector<8xf32>
      %68 = vector.shape_cast %67 : vector<8xf32> to vector<8x1xf32>
      %69 = arith.addf %66, %68 : vector<8x1xf32>
      %c0_35 = arith.constant 0 : index
      %c1_36 = arith.constant 1 : index
      %70 = vector.load %arg11[%c0_35, %c1_36] : memref<8x4xf32, #tpu.memory_space<vmem>>, vector<8x1xf32>
      tpu.vector_store %arg11[%c0_35, %c1_36], %69 {strides = array<i32>} : memref<8x4xf32, #tpu.memory_space<vmem>>, vector<8x1xf32>,
      %c0_37 = arith.constant 0 : index
      %c8_38 = arith.constant 8 : index
      %71 = vector.load %arg12[%c0_37, %c8_38] : memref<8x32xf32, #tpu.memory_space<vmem>>, vector<8x8xf32>
      %72 = vector.broadcast %61 : vector<8x1xf32> to vector<8x8xf32>
      %73 = arith.mulf %72, %71 : vector<8x8xf32>
      %cst_39 = arith.constant dense<0.000000e+00> : vector<8x8xf32>
      %74 = tpu.matmul %64, %52, %cst_39 {dimension_numbers = #tpu.dot_dimension_numbers<[1], [0], [0], [1], [0, 0, 1, 1], [], []>} : vector<8x8xf32>, vector<8x8xf32>, vector<8x8xf32> -> vector<8x8xf32>
      %75 = arith.addf %73, %74 : vector<8x8xf32>
      %c0_40 = arith.constant 0 : index
      %c8_41 = arith.constant 8 : index
      %76 = vector.load %arg12[%c0_40, %c8_41] : memref<8x32xf32, #tpu.memory_space<vmem>>, vector<8x8xf32>
      tpu.vector_store %arg12[%c0_40, %c8_41], %75 {strides = array<i32>} : memref<8x32xf32, #tpu.memory_space<vmem>>, vector<8x8xf32>,
      %c0_42 = arith.constant 0 : index
      %c1_43 = arith.constant 1 : index
      %77 = vector.load %arg10[%c0_42, %c1_43] : memref<8x4xf32, #tpu.memory_space<vmem>>, vector<8x1xf32>
      tpu.vector_store %arg10[%c0_42, %c1_43], %59 {strides = array<i32>} : memref<8x4xf32, #tpu.memory_space<vmem>>, vector<8x1xf32>,
      %c0_44 = arith.constant 0 : index
      %c16 = arith.constant 16 : index
      %78 = vector.load %arg9[%c0_44, %c16] : memref<8x32xf32, #tpu.memory_space<vmem>>, vector<8x8xf32>
      %79 = vector.extract_strided_slice %12 {offsets = [0, 16], sizes = [8, 8], strides = [1, 1]} : vector<8x64xf32> to vector<8x8xf32>
      %80 = vector.extract_strided_slice %12 {offsets = [0, 48], sizes = [8, 8], strides = [1, 1]} : vector<8x64xf32> to vector<8x8xf32>
      %cst_45 = arith.constant dense<0.000000e+00> : vector<8x8xf32>
      %81 = tpu.matmul %78, %79, %cst_45 {dimension_numbers = #tpu.dot_dimension_numbers<[1], [1], [0], [0], [0, 0, 1, 0], [], []>} : vector<8x8xf32>, vector<8x8xf32>, vector<8x8xf32> -> vector<8x8xf32>
      %cst_46 = arith.constant 0xFF800000 : f32
      %82 = vector.broadcast %cst_46 : f32 to vector<8x8xf32>
      %83 = arith.select %21, %81, %82 : vector<8x8xi1>, vector<8x8xf32>
      %c0_47 = arith.constant 0 : index
      %c2 = arith.constant 2 : index
      %84 = vector.load %arg10[%c0_47, %c2] : memref<8x4xf32, #tpu.memory_space<vmem>>, vector<8x1xf32>
      %cst_48 = arith.constant dense<0xFF800000> : vector<8xf32>
      %85 = vector.multi_reduction <maximumf>, %83, %cst_48 [1] : vector<8x8xf32> to vector<8xf32>
      %86 = vector.shape_cast %85 : vector<8xf32> to vector<8x1xf32>
      %87 = arith.maximumf %84, %86 : vector<8x1xf32>
      %88 = arith.subf %84, %87 : vector<8x1xf32>
      %89 = math.exp %88 : vector<8x1xf32>
      %90 = vector.broadcast %87 : vector<8x1xf32> to vector<8x8xf32>
      %91 = arith.subf %83, %90 : vector<8x8xf32>
      %92 = math.exp %91 : vector<8x8xf32>
      %c0_49 = arith.constant 0 : index
      %c2_50 = arith.constant 2 : index
      %93 = vector.load %arg11[%c0_49, %c2_50] : memref<8x4xf32, #tpu.memory_space<vmem>>, vector<8x1xf32>
      %94 = arith.mulf %89, %93 : vector<8x1xf32>
      %cst_51 = arith.constant dense<0.000000e+00> : vector<8xf32>
      %95 = vector.multi_reduction <add>, %92, %cst_51 [1] : vector<8x8xf32> to vector<8xf32>
      %96 = vector.shape_cast %95 : vector<8xf32> to vector<8x1xf32>
      %97 = arith.addf %94, %96 : vector<8x1xf32>
      %c0_52 = arith.constant 0 : index
      %c2_53 = arith.constant 2 : index
      %98 = vector.load %arg11[%c0_52, %c2_53] : memref<8x4xf32, #tpu.memory_space<vmem>>, vector<8x1xf32>
      tpu.vector_store %arg11[%c0_52, %c2_53], %97 {strides = array<i32>} : memref<8x4xf32, #tpu.memory_space<vmem>>, vector<8x1xf32>,
      %c0_54 = arith.constant 0 : index
      %c16_55 = arith.constant 16 : index
      %99 = vector.load %arg12[%c0_54, %c16_55] : memref<8x32xf32, #tpu.memory_space<vmem>>, vector<8x8xf32>
      %100 = vector.broadcast %89 : vector<8x1xf32> to vector<8x8xf32>
      %101 = arith.mulf %100, %99 : vector<8x8xf32>
      %cst_56 = arith.constant dense<0.000000e+00> : vector<8x8xf32>
      %102 = tpu.matmul %92, %80, %cst_56 {dimension_numbers = #tpu.dot_dimension_numbers<[1], [0], [0], [1], [0, 0, 1, 1], [], []>} : vector<8x8xf32>, vector<8x8xf32>, vector<8x8xf32> -> vector<8x8xf32>
      %103 = arith.addf %101, %102 : vector<8x8xf32>
      %c0_57 = arith.constant 0 : index
      %c16_58 = arith.constant 16 : index
      %104 = vector.load %arg12[%c0_57, %c16_58] : memref<8x32xf32, #tpu.memory_space<vmem>>, vector<8x8xf32>
      tpu.vector_store %arg12[%c0_57, %c16_58], %103 {strides = array<i32>} : memref<8x32xf32, #tpu.memory_space<vmem>>, vector<8x8xf32>,
      %c0_59 = arith.constant 0 : index
      %c2_60 = arith.constant 2 : index
      %105 = vector.load %arg10[%c0_59, %c2_60] : memref<8x4xf32, #tpu.memory_space<vmem>>, vector<8x1xf32>
      tpu.vector_store %arg10[%c0_59, %c2_60], %87 {strides = array<i32>} : memref<8x4xf32, #tpu.memory_space<vmem>>, vector<8x1xf32>,
      %c0_61 = arith.constant 0 : index
      %c24 = arith.constant 24 : index
      %106 = vector.load %arg9[%c0_61, %c24] : memref<8x32xf32, #tpu.memory_space<vmem>>, vector<8x8xf32>
      %107 = vector.extract_strided_slice %12 {offsets = [0, 24], sizes = [8, 8], strides = [1, 1]} : vector<8x64xf32> to vector<8x8xf32>
      %108 = vector.extract_strided_slice %12 {offsets = [0, 56], sizes = [8, 8], strides = [1, 1]} : vector<8x64xf32> to vector<8x8xf32>
      %cst_62 = arith.constant dense<0.000000e+00> : vector<8x8xf32>
      %109 = tpu.matmul %106, %107, %cst_62 {dimension_numbers = #tpu.dot_dimension_numbers<[1], [1], [0], [0], [0, 0, 1, 0], [], []>} : vector<8x8xf32>, vector<8x8xf32>, vector<8x8xf32> -> vector<8x8xf32>
      %cst_63 = arith.constant 0xFF800000 : f32
      %110 = vector.broadcast %cst_63 : f32 to vector<8x8xf32>
      %111 = arith.select %21, %109, %110 : vector<8x8xi1>, vector<8x8xf32>
      %c0_64 = arith.constant 0 : index
      %c3 = arith.constant 3 : index
      %112 = vector.load %arg10[%c0_64, %c3] : memref<8x4xf32, #tpu.memory_space<vmem>>, vector<8x1xf32>
      %cst_65 = arith.constant dense<0xFF800000> : vector<8xf32>
      %113 = vector.multi_reduction <maximumf>, %111, %cst_65 [1] : vector<8x8xf32> to vector<8xf32>
      %114 = vector.shape_cast %113 : vector<8xf32> to vector<8x1xf32>
      %115 = arith.maximumf %112, %114 : vector<8x1xf32>
      %116 = arith.subf %112, %115 : vector<8x1xf32>
      %117 = math.exp %116 : vector<8x1xf32>
      %118 = vector.broadcast %115 : vector<8x1xf32> to vector<8x8xf32>
      %119 = arith.subf %111, %118 : vector<8x8xf32>
      %120 = math.exp %119 : vector<8x8xf32>
      %c0_66 = arith.constant 0 : index
      %c3_67 = arith.constant 3 : index
      %121 = vector.load %arg11[%c0_66, %c3_67] : memref<8x4xf32, #tpu.memory_space<vmem>>, vector<8x1xf32>
      %122 = arith.mulf %117, %121 : vector<8x1xf32>
      %cst_68 = arith.constant dense<0.000000e+00> : vector<8xf32>
      %123 = vector.multi_reduction <add>, %120, %cst_68 [1] : vector<8x8xf32> to vector<8xf32>
      %124 = vector.shape_cast %123 : vector<8xf32> to vector<8x1xf32>
      %125 = arith.addf %122, %124 : vector<8x1xf32>
      %c0_69 = arith.constant 0 : index
      %c3_70 = arith.constant 3 : index
      %126 = vector.load %arg11[%c0_69, %c3_70] : memref<8x4xf32, #tpu.memory_space<vmem>>, vector<8x1xf32>
      tpu.vector_store %arg11[%c0_69, %c3_70], %125 {strides = array<i32>} : memref<8x4xf32, #tpu.memory_space<vmem>>, vector<8x1xf32>,
      %c0_71 = arith.constant 0 : index
      %c24_72 = arith.constant 24 : index
      %127 = vector.load %arg12[%c0_71, %c24_72] : memref<8x32xf32, #tpu.memory_space<vmem>>, vector<8x8xf32>
      %128 = vector.broadcast %117 : vector<8x1xf32> to vector<8x8xf32>
      %129 = arith.mulf %128, %127 : vector<8x8xf32>
      %cst_73 = arith.constant dense<0.000000e+00> : vector<8x8xf32>
      %130 = tpu.matmul %120, %108, %cst_73 {dimension_numbers = #tpu.dot_dimension_numbers<[1], [0], [0], [1], [0, 0, 1, 1], [], []>} : vector<8x8xf32>, vector<8x8xf32>, vector<8x8xf32> -> vector<8x8xf32>
      %131 = arith.addf %129, %130 : vector<8x8xf32>
      %c0_74 = arith.constant 0 : index
      %c24_75 = arith.constant 24 : index
      %132 = vector.load %arg12[%c0_74, %c24_75] : memref<8x32xf32, #tpu.memory_space<vmem>>, vector<8x8xf32>
      tpu.vector_store %arg12[%c0_74, %c24_75], %131 {strides = array<i32>} : memref<8x32xf32, #tpu.memory_space<vmem>>, vector<8x8xf32>,
      %c0_76 = arith.constant 0 : index
      %c3_77 = arith.constant 3 : index
      %133 = vector.load %arg10[%c0_76, %c3_77] : memref<8x4xf32, #tpu.memory_space<vmem>>, vector<8x1xf32>
      tpu.vector_store %arg10[%c0_76, %c3_77], %115 {strides = array<i32>} : memref<8x4xf32, #tpu.memory_space<vmem>>, vector<8x1xf32>,
    } else {
    }
    %6 = arith.cmpi eq, %arg2, %arg1 : i32
    %7 = arith.extui %6 : i1 to i32
    %c0_i32_2 = arith.constant 0 : i32
    %8 = arith.cmpi ne, %7, %c0_i32_2 : i32
    scf.if %8 {
      %c0 = arith.constant 0 : index
      %c0_3 = arith.constant 0 : index
      %9 = vector.load %arg11[%c0, %c0_3] : memref<8x4xf32, #tpu.memory_space<vmem>>, vector<8x1xf32>
      %10 = tpu.reciprocal %9 {approx = true} : vector<8x1xf32> -> vector<8x1xf32>
      %11 = arith.mulf %9, %10 : vector<8x1xf32>
      %cst = arith.constant 2.000000e+00 : f32
      %12 = vector.broadcast %cst : f32 to vector<8x1xf32>
      %13 = arith.subf %12, %11 : vector<8x1xf32>
      %14 = arith.mulf %10, %13 : vector<8x1xf32>
      %c0_4 = arith.constant 0 : index
      %c0_5 = arith.constant 0 : index
      %15 = vector.load %arg12[%c0_4, %c0_5] : memref<8x32xf32, #tpu.memory_space<vmem>>, vector<8x8xf32>
      %16 = vector.broadcast %14 : vector<8x1xf32> to vector<8x8xf32>
      %17 = arith.mulf %15, %16 : vector<8x8xf32>
      %c0_6 = arith.constant 0 : index
      %c0_7 = arith.constant 0 : index
      %18 = vector.load %arg12[%c0_6, %c0_7] : memref<8x32xf32, #tpu.memory_space<vmem>>, vector<8x8xf32>
      tpu.vector_store %arg12[%c0_6, %c0_7], %17 {strides = array<i32>} : memref<8x32xf32, #tpu.memory_space<vmem>>, vector<8x8xf32>,
      %c0_8 = arith.constant 0 : index
      %c1 = arith.constant 1 : index
      %19 = vector.load %arg11[%c0_8, %c1] : memref<8x4xf32, #tpu.memory_space<vmem>>, vector<8x1xf32>
      %20 = tpu.reciprocal %19 {approx = true} : vector<8x1xf32> -> vector<8x1xf32>
      %21 = arith.mulf %19, %20 : vector<8x1xf32>
      %cst_9 = arith.constant 2.000000e+00 : f32
      %22 = vector.broadcast %cst_9 : f32 to vector<8x1xf32>
      %23 = arith.subf %22, %21 : vector<8x1xf32>
      %24 = arith.mulf %20, %23 : vector<8x1xf32>
      %c0_10 = arith.constant 0 : index
      %c8 = arith.constant 8 : index
      %25 = vector.load %arg12[%c0_10, %c8] : memref<8x32xf32, #tpu.memory_space<vmem>>, vector<8x8xf32>
      %26 = vector.broadcast %24 : vector<8x1xf32> to vector<8x8xf32>
      %27 = arith.mulf %25, %26 : vector<8x8xf32>
      %c0_11 = arith.constant 0 : index
      %c8_12 = arith.constant 8 : index
      %28 = vector.load %arg12[%c0_11, %c8_12] : memref<8x32xf32, #tpu.memory_space<vmem>>, vector<8x8xf32>
      tpu.vector_store %arg12[%c0_11, %c8_12], %27 {strides = array<i32>} : memref<8x32xf32, #tpu.memory_space<vmem>>, vector<8x8xf32>,
      %c0_13 = arith.constant 0 : index
      %c2 = arith.constant 2 : index
      %29 = vector.load %arg11[%c0_13, %c2] : memref<8x4xf32, #tpu.memory_space<vmem>>, vector<8x1xf32>
      %30 = tpu.reciprocal %29 {approx = true} : vector<8x1xf32> -> vector<8x1xf32>
      %31 = arith.mulf %29, %30 : vector<8x1xf32>
      %cst_14 = arith.constant 2.000000e+00 : f32
      %32 = vector.broadcast %cst_14 : f32 to vector<8x1xf32>
      %33 = arith.subf %32, %31 : vector<8x1xf32>
      %34 = arith.mulf %30, %33 : vector<8x1xf32>
      %c0_15 = arith.constant 0 : index
      %c16 = arith.constant 16 : index
      %35 = vector.load %arg12[%c0_15, %c16] : memref<8x32xf32, #tpu.memory_space<vmem>>, vector<8x8xf32>
      %36 = vector.broadcast %34 : vector<8x1xf32> to vector<8x8xf32>
      %37 = arith.mulf %35, %36 : vector<8x8xf32>
      %c0_16 = arith.constant 0 : index
      %c16_17 = arith.constant 16 : index
      %38 = vector.load %arg12[%c0_16, %c16_17] : memref<8x32xf32, #tpu.memory_space<vmem>>, vector<8x8xf32>
      tpu.vector_store %arg12[%c0_16, %c16_17], %37 {strides = array<i32>} : memref<8x32xf32, #tpu.memory_space<vmem>>, vector<8x8xf32>,
      %c0_18 = arith.constant 0 : index
      %c3 = arith.constant 3 : index
      %39 = vector.load %arg11[%c0_18, %c3] : memref<8x4xf32, #tpu.memory_space<vmem>>, vector<8x1xf32>
      %40 = tpu.reciprocal %39 {approx = true} : vector<8x1xf32> -> vector<8x1xf32>
      %41 = arith.mulf %39, %40 : vector<8x1xf32>
      %cst_19 = arith.constant 2.000000e+00 : f32
      %42 = vector.broadcast %cst_19 : f32 to vector<8x1xf32>
      %43 = arith.subf %42, %41 : vector<8x1xf32>
      %44 = arith.mulf %40, %43 : vector<8x1xf32>
      %c0_20 = arith.constant 0 : index
      %c24 = arith.constant 24 : index
      %45 = vector.load %arg12[%c0_20, %c24] : memref<8x32xf32, #tpu.memory_space<vmem>>, vector<8x8xf32>
      %46 = vector.broadcast %44 : vector<8x1xf32> to vector<8x8xf32>
      %47 = arith.mulf %45, %46 : vector<8x8xf32>
      %c0_21 = arith.constant 0 : index
      %c24_22 = arith.constant 24 : index
      %48 = vector.load %arg12[%c0_21, %c24_22] : memref<8x32xf32, #tpu.memory_space<vmem>>, vector<8x8xf32>
      tpu.vector_store %arg12[%c0_21, %c24_22], %47 {strides = array<i32>} : memref<8x32xf32, #tpu.memory_space<vmem>>, vector<8x8xf32>,
      %c0_23 = arith.constant 0 : index
      %c0_24 = arith.constant 0 : index
      %49 = vector.load %arg12[%c0_23, %c0_24] : memref<8x32xf32, #tpu.memory_space<vmem>>, vector<8x32xf32>
      %c0_25 = arith.constant 0 : index
      %c0_26 = arith.constant 0 : index
      %50 = vector.load %arg7[%c0_25, %c0_26] : memref<32x32xf32, #tpu.memory_space<vmem>>, vector<32x32xf32>
      %cst_27 = arith.constant dense<0.000000e+00> : vector<8x32xf32>
      %51 = tpu.matmul %49, %50, %cst_27 {dimension_numbers = #tpu.dot_dimension_numbers<[1], [0], [0], [1], [0, 0, 1, 1], [], []>} : vector<8x32xf32>, vector<32x32xf32>, vector<8x32xf32> -> vector<8x32xf32>
      %c0_28 = arith.constant 0 : index
      %c0_29 = arith.constant 0 : index
      %c0_30 = arith.constant 0 : index
      %52 = vector.load %arg8[%c0_28, %c0_29, %c0_30] : memref<1x8x32xf32, #tpu.memory_space<vmem>>, vector<1x8x32xf32>
      %53 = vector.shape_cast %52 : vector<1x8x32xf32> to vector<8x32xf32>
      %54 = vector.shape_cast %51 : vector<8x32xf32> to vector<1x8x32xf32>
      tpu.vector_store %arg8[%c0_28, %c0_29, %c0_30], %54 {strides = array<i32>} : memref<1x8x32xf32, #tpu.memory_space<vmem>>, vector<1x8x32xf32>,
    } else {
    }
    return
  }
  func.func @transform_0(%arg0: i32, %arg1: i32, %arg2: i32) -> (i32, i32, i32) {
    %c0_i32 = arith.constant 0 : i32
    %c0_i32_0 = arith.constant 0 : i32
    return %arg0, %arg1, %c0_i32 : i32, i32, i32
  }
  func.func @transform_1(%arg0: i32, %arg1: i32, %arg2: i32) -> (i32, i32, i32) {
    %0 = arith.minsi %arg2, %arg1 : i32
    %c0_i32 = arith.constant 0 : i32
    %c0_i32_0 = arith.constant 0 : i32
    return %arg0, %0, %c0_i32 : i32, i32, i32
  }
  func.func @transform_2(%arg0: i32, %arg1: i32, %arg2: i32) -> (i32, i32) {
    %c0_i32 = arith.constant 0 : i32
    %c0_i32_0 = arith.constant 0 : i32
    %c0_i32_1 = arith.constant 0 : i32
    return %c0_i32, %c0_i32_0 : i32, i32
  }
  func.func @transform_3(%arg0: i32, %arg1: i32, %arg2: i32) -> (i32, i32) {
    %c0_i32 = arith.constant 0 : i32
    %c0_i32_0 = arith.constant 0 : i32
    %c0_i32_1 = arith.constant 0 : i32
    return %c0_i32, %c0_i32_0 : i32, i32
  }
  func.func @transform_4(%arg0: i32, %arg1: i32, %arg2: i32) -> (i32, i32) {
    %c0_i32 = arith.constant 0 : i32
    %c0_i32_0 = arith.constant 0 : i32
    %c0_i32_1 = arith.constant 0 : i32
    return %c0_i32, %c0_i32_0 : i32, i32
  }
  func.func @transform_5(%arg0: i32, %arg1: i32, %arg2: i32) -> (i32, i32, i32) {
    %c0_i32 = arith.constant 0 : i32
    %c0_i32_0 = arith.constant 0 : i32
    return %arg0, %arg1, %c0_i32 : i32, i32, i32
  }
}

</mosaic_0001>

<llo_original>
// kernel: tpu_custom_call.1
$region0: #{tpu_custom_call.1}
  #allocation0 [shape = 'u32[]', space=smem, size = 0x4, offset = 0x4, fixed_abs, tag = 'smem constant byte address 0x4 - core index']
  #allocation1 [shape = 'u32[72,128]{1,0:T(1,128)}', space=vmem, size = 0x9000, scoped, tag = 'internal scratch']
  #allocation2 [shape = 'f32[8,32]{1,0:T(8,128)}', space=vmem, size = 0x1000, scoped, tag = 'scratch operand']
  #allocation3 [shape = 'f32[8,4]{1,0:T(8,128)}', space=vmem, size = 0x1000, scoped, tag = 'scratch operand']
  #allocation4 [shape = 'f32[8,4]{1,0:T(8,128)}', space=vmem, size = 0x1000, scoped, tag = 'scratch operand']
  #allocation5 [shape = 'f32[8,32]{1,0:T(8,128)}', space=vmem, size = 0x1000, scoped, tag = 'scratch operand']
  %s0 = inlined_call_operand.hbm [shape: f32[2,8,32], index: 0, kind: input, shape index: {}]
  %s1 = inlined_call_operand.hbm [shape: f32[2,8,32], index: 1, kind: input, shape index: {}]
  %s2 = inlined_call_operand.hbm [shape: f32[32,32], index: 2, kind: input, shape index: {}]
  %s3 = inlined_call_operand.hbm [shape: f32[32,64], index: 3, kind: input, shape index: {}]
  %s4 = inlined_call_operand.hbm [shape: f32[32,32], index: 4, kind: input, shape index: {}]
  %s5 = inlined_call_operand.hbm [shape: f32[2,8,32], index: 5, kind: output, shape index: {}]
  %s6 = sld [smem:[#allocation0]]
  $region85: #{tpu_custom_call.1} parent=0
    _
  %s8 = ssub.s32 1, %s6
  %s9 = scalar_select 0, %s8, %s6
  $region1: #{tpu_custom_call.1} parent=0
    #allocation6 [shape = 'u8[8192]{0}', space=vmem, size = 0x2000, scoped, tag = 'input window, operand 0']
    #allocation7 [shape = 's32[2]{0}', space=sflag, size = 0x8, scoped, tag = 'scoped memory for tpu_custom_call.1']
    #allocation8 [shape = 's32[2]{0}', space=sflag, size = 0x8, scoped, tag = 'scoped memory for tpu_custom_call.1']
    #allocation9 [shape = 'u8[8192]{0}', space=vmem, size = 0x2000, scoped, tag = 'input window, operand 1']
    #allocation10 [shape = 's32[2]{0}', space=sflag, size = 0x8, scoped, tag = 'scoped memory for tpu_custom_call.1']
    #allocation11 [shape = 'u8[16384]{0}', space=vmem, size = 0x4000, scoped, tag = 'input window, operand 2, single buffered']
    #allocation12 [shape = 'u8[16384]{0}', space=vmem, size = 0x4000, scoped, tag = 'input window, operand 3, single buffered']
    #allocation13 [shape = 's32[1]{0}', space=sflag, size = 0x4, scoped, tag = 'scoped memory for tpu_custom_call.1']
    #allocation14 [shape = 'u8[16384]{0}', space=vmem, size = 0x4000, scoped, tag = 'input window, operand 4, single buffered']
    #allocation15 [shape = 'u8[8192]{0}', space=vmem, size = 0x2000, scoped, tag = 'output window, operand 0']
    %10 = vsyncpa [#allocation7], 0
    %s11 = scalar_lea.sflag [#allocation7], 1
    %12 = vsyncpa %s11, 0
    %13 = vsyncpa [#allocation10], 0
    %s14 = scalar_lea.sflag [#allocation10], 1
    %15 = vsyncpa %s14, 0
    %16 = vsyncpa [#allocation13], 0
    %17 = vsyncpa [#allocation8], 0
    %s18 = scalar_lea.sflag [#allocation8], 1
    %19 = vsyncpa %s18, 0
    loop: start=0, step=1, limit=4
    $region2: #{tpu_custom_call.1} parent=1 // loop_pre_header
      _
    $region3: #{tpu_custom_call.1} parent=1 // loop_header
      %s21 = sphi 0, %s25
      %p22 = scmp.ge.s32.totalorder %s21, 4
      %s28 = sphi 0, %s47
      %s29 = sphi 0, %s43
      %s30 = sphi 0, %s39
      %s31 = sphi 0, %s28
      %s32 = sphi 0, %s29
      %s33 = sphi 0, %s30
      %s34 = sphi 0, %s31
      %s35 = sphi 0, %s32
      %s36 = sphi 0, %s33
      %s52 = sphi 0, %s54
      %s55 = sphi 0, %s52
      %s56 = sphi 0, %s55
      %s72 = sphi 0, %s56
      %s84 = sphi 0, %s86
      %s87 = sphi 0, %s84
      %s88 = sphi 0, %s87
      %s104 = sphi 0, %s88
      %s108 = sphi 0, %s108
      %s110 = sphi 0, %s108
      %s111 = sphi 0, %s110
      %s125 = sphi 0, %s111
      %s129 = sphi 0, %s129
      %s131 = sphi 0, %s129
      %s132 = sphi 0, %s131
      %s146 = sphi 0, %s132
      %s150 = sphi 0, %s150
      %s152 = sphi 0, %s150
      %s153 = sphi 0, %s152
      %s167 = sphi 0, %s153
      %s175 = sphi 0, %s177
      %s178 = sphi 0, %s175
      %s179 = sphi 0, %s178
      %s195 = sphi 0, %s179
    $region4: #{tpu_custom_call.1} parent=1 // loop_header_branch
      %24 = sbr.rel (%p22) target = $region8
    $region5: #{tpu_custom_call.1} parent=1 // loop_body
      %s26 = ssub.s32 %s21, 1
      %s27 = ssub.s32 %s21, 2
      %s37 = sadd.s32 1, %s30
      %p38 = scmp.ge.s32.totalorder %s37, 1
      %s39 = scalar_select %p38, 0, %s37
      %s40 = sadd.s32 1, %s29
      %s41 = scalar_select %p38, %s40, %s29
      %p42 = scmp.ge.s32.totalorder %s41, 1
      %s43 = scalar_select %p42, 0, %s41
      %s44 = sadd.s32 1, %s28
      %s45 = scalar_select %p42, %s44, %s28
      %p46 = scmp.ge.s32.totalorder %s45, 2
      %s47 = scalar_select %p46, 0, %s45
      %s48 = ssub.s32 %s28, %s47
      %s49 = ssub.s32 %s29, %s43
      %s50 = sor.u32 %s48, %s49
      %p51 = scmp.eq.s32.totalorder %s50, 0
      %s53 = sadd.s32 %s52, 1
      %s54 = scalar_select %p51, %s52, %s53
      %p57 = pneg %p51
      %p58 = scmp.eq.s32.totalorder %s21, 1
      %p59 = por %p57, %p58
      %p60 = scmp.ne.s32.totalorder %s52, %s55
      %p61 = scmp.eq.s32.totalorder %s21, 0
      %p62 = por %p60, %p61
      %p63 = scmp.ne.s32.totalorder %s52, %s55
      %p64 = scmp.eq.s32.totalorder %s26, 1
      %p65 = por %p63, %p64
      %p66 = scmp.ne.s32.totalorder %s55, %s56
      %p67 = scmp.eq.s32.totalorder %s26, 0
      %p68 = por %p66, %p67
      %p69 = scmp.ne.s32.totalorder %s55, %s56
      %p70 = scmp.eq.s32.totalorder %s27, 1
      %p71 = por %p69, %p70
      %p73 = scmp.ne.s32.totalorder %s56, %s72
      %p74 = scmp.eq.s32.totalorder %s27, 0
      %p75 = por %p73, %p74
      %p76 = scmp.lt.s32.totalorder %s30, %s29
      %s77 = scalar_select %p76, %s30, %s29
      %p78 = scmp.lt.s32.totalorder %s39, %s43
      %s79 = scalar_select %p78, %s39, %s43
      %s80 = ssub.s32 %s28, %s47
      %s81 = ssub.s32 %s77, %s79
      %s82 = sor.u32 %s80, %s81
      %p83 = scmp.eq.s32.totalorder %s82, 0
      %s85 = sadd.s32 %s84, 1
      %s86 = scalar_select %p83, %s84, %s85
      %p89 = pneg %p83
      %p90 = scmp.eq.s32.totalorder %s21, 1
      %p91 = por %p89, %p90
      %p92 = scmp.ne.s32.totalorder %s84, %s87
      %p93 = scmp.eq.s32.totalorder %s21, 0
      %p94 = por %p92, %p93
      %p95 = scmp.ne.s32.totalorder %s84, %s87
      %p96 = scmp.eq.s32.totalorder %s26, 1
      %p97 = por %p95, %p96
      %p98 = scmp.ne.s32.totalorder %s87, %s88
      %p99 = scmp.eq.s32.totalorder %s26, 0
      %p100 = por %p98, %p99
      %p101 = scmp.ne.s32.totalorder %s87, %s88
      %p102 = scmp.eq.s32.totalorder %s27, 1
      %p103 = por %p101, %p102
      %p105 = scmp.ne.s32.totalorder %s88, %s104
      %p106 = scmp.eq.s32.totalorder %s27, 0
      %p107 = por %p105, %p106
      %s109 = sadd.s32 %s108, 1
      %p112 = scmp.eq.s32.totalorder %s21, 1
      %p113 = scmp.ne.s32.totalorder %s108, %s110
      %p114 = scmp.eq.s32.totalorder %s21, 0
      %p115 = por %p113, %p114
      %p116 = scmp.ne.s32.totalorder %s108, %s110
      %p117 = scmp.eq.s32.totalorder %s26, 1
      %p118 = por %p116, %p117
      %p119 = scmp.ne.s32.totalorder %s110, %s111
      %p120 = scmp.eq.s32.totalorder %s26, 0
      %p121 = por %p119, %p120
      %p122 = scmp.ne.s32.totalorder %s110, %s111
      %p123 = scmp.eq.s32.totalorder %s27, 1
      %p124 = por %p122, %p123
      %p126 = scmp.ne.s32.totalorder %s111, %s125
      %p127 = scmp.eq.s32.totalorder %s27, 0
      %p128 = por %p126, %p127
      %s130 = sadd.s32 %s129, 1
      %p133 = scmp.eq.s32.totalorder %s21, 1
      %p134 = scmp.ne.s32.totalorder %s129, %s131
      %p135 = scmp.eq.s32.totalorder %s21, 0
      %p136 = por %p134, %p135
      %p137 = scmp.ne.s32.totalorder %s129, %s131
      %p138 = scmp.eq.s32.totalorder %s26, 1
      %p139 = por %p137, %p138
      %p140 = scmp.ne.s32.totalorder %s131, %s132
      %p141 = scmp.eq.s32.totalorder %s26, 0
      %p142 = por %p140, %p141
      %p143 = scmp.ne.s32.totalorder %s131, %s132
      %p144 = scmp.eq.s32.totalorder %s27, 1
      %p145 = por %p143, %p144
      %p147 = scmp.ne.s32.totalorder %s132, %s146
      %p148 = scmp.eq.s32.totalorder %s27, 0
      %p149 = por %p147, %p148
      %s151 = sadd.s32 %s150, 1
      %p154 = scmp.eq.s32.totalorder %s21, 1
      %p155 = scmp.ne.s32.totalorder %s150, %s152
      %p156 = scmp.eq.s32.totalorder %s21, 0
      %p157 = por %p155, %p156
      %p158 = scmp.ne.s32.totalorder %s150, %s152
      %p159 = scmp.eq.s32.totalorder %s26, 1
      %p160 = por %p158, %p159
      %p161 = scmp.ne.s32.totalorder %s152, %s153
      %p162 = scmp.eq.s32.totalorder %s26, 0
      %p163 = por %p161, %p162
      %p164 = scmp.ne.s32.totalorder %s152, %s153
      %p165 = scmp.eq.s32.totalorder %s27, 1
      %p166 = por %p164, %p165
      %p168 = scmp.ne.s32.totalorder %s153, %s167
      %p169 = scmp.eq.s32.totalorder %s27, 0
      %p170 = por %p168, %p169
      %s171 = ssub.s32 %s28, %s47
      %s172 = ssub.s32 %s29, %s43
      %s173 = sor.u32 %s171, %s172
      %p174 = scmp.eq.s32.totalorder %s173, 0
      %s176 = sadd.s32 %s175, 1
      %s177 = scalar_select %p174, %s175, %s176
      %p180 = pneg %p174
      %p181 = scmp.eq.s32.totalorder %s21, 1
      %p182 = por %p180, %p181
      %p183 = scmp.ne.s32.totalorder %s175, %s178
      %p184 = scmp.eq.s32.totalorder %s21, 0
      %p185 = por %p183, %p184
      %p186 = scmp.ne.s32.totalorder %s175, %s178
      %p187 = scmp.eq.s32.totalorder %s26, 1
      %p188 = por %p186, %p187
      %p189 = scmp.ne.s32.totalorder %s178, %s179
      %p190 = scmp.eq.s32.totalorder %s26, 0
      %p191 = por %p189, %p190
      %p192 = scmp.ne.s32.totalorder %s178, %s179
      %p193 = scmp.eq.s32.totalorder %s27, 1
      %p194 = por %p192, %p193
      %p196 = scmp.ne.s32.totalorder %s179, %s195
      %p197 = scmp.eq.s32.totalorder %s27, 0
      %p198 = por %p196, %p197
      %p199 = scmp.le.s32.totalorder 1, %s21
      %p200 = scmp.lt.s32.totalorder %s21, 3
      %p201 = pnand %p199, %p200
      %p202 = pneg %p201
      // Predicated region
      $region9: #{tpu_custom_call.1} parent=5 // pred_check
        _
      $region10: #{tpu_custom_call.1} parent=5 // pred_check_branch
        %204 = sbr.rel (%p201) target = $region12
      $region11: #{tpu_custom_call.1} parent=5 // pred_region
        %s205 = ssub.s32 %s21, 1
        // Predicated region
        $region13: #{tpu_custom_call.1} parent=11 // pred_check
          %p206 = pneg %p121
        $region14: #{tpu_custom_call.1} parent=11 // pred_check_branch
          %208 = sbr.rel (%p206) target = $region16
        $region15: #{tpu_custom_call.1} parent=11 // pred_region
          %210 = vsyncadd [#allocation10], 0
          %s211 = sshll.u32 %s2, 4
          %s212 = int_to_ptr.hbm [resolvable:$true] %s211
          %s213 = sshll.u32 [#allocation11], 4
          %s214 = int_to_ptr.vmem [resolvable:$true] %s213
          %219 = dma.hbm_to_vmem [thread:$0]  %s212, 512, %s214, [#allocation10], 128, 128, 8
        $region16: #{tpu_custom_call.1} parent=11 // pred_fallthru
          _
        // Predicated region
        $region17: #{tpu_custom_call.1} parent=11 // pred_check
          %p220 = pneg %p142
        $region18: #{tpu_custom_call.1} parent=11 // pred_check_branch
          %222 = sbr.rel (%p220) target = $region20
        $region19: #{tpu_custom_call.1} parent=11 // pred_region
          %224 = vsyncadd [#allocation13], 0
          %s225 = sshll.u32 %s3, 4
          %s226 = int_to_ptr.hbm [resolvable:$true] %s225
          %s227 = sshll.u32 [#allocation12], 4
          %s228 = int_to_ptr.vmem [resolvable:$true] %s227
          %233 = dma.hbm_to_vmem [thread:$0]  %s226, 512, %s228, [#allocation13], 128, 128, 8
        $region20: #{tpu_custom_call.1} parent=11 // pred_fallthru
          _
        // Predicated region
        $region21: #{tpu_custom_call.1} parent=11 // pred_check
          %p234 = pneg %p163
        $region22: #{tpu_custom_call.1} parent=11 // pred_check_branch
          %236 = sbr.rel (%p234) target = $region24
        $region23: #{tpu_custom_call.1} parent=11 // pred_region
          %238 = vsyncadd [#allocation13], 0
          %s239 = sshll.u32 %s4, 4
          %s240 = int_to_ptr.hbm [resolvable:$true] %s239
          %s241 = sshll.u32 [#allocation14], 4
          %s242 = int_to_ptr.vmem [resolvable:$true] %s241
          %247 = dma.hbm_to_vmem [thread:$0]  %s240, 512, %s242, [#allocation13], 128, 128, 8
        $region24: #{tpu_custom_call.1} parent=11 // pred_fallthru
          _
      $region12: #{tpu_custom_call.1} parent=5 // pred_fallthru
        _
      %p248 = scmp.lt.s32.totalorder %s21, 2
      // Predicated region
      $region25: #{tpu_custom_call.1} parent=5 // pred_check
        %p249 = pneg %p248
      $region26: #{tpu_custom_call.1} parent=5 // pred_check_branch
        %251 = sbr.rel (%p249) target = $region28
      $region27: #{tpu_custom_call.1} parent=5 // pred_region
        // Predicated region
        $region29: #{tpu_custom_call.1} parent=27 // pred_check
          %p252 = pneg %p62
        $region30: #{tpu_custom_call.1} parent=27 // pred_check_branch
          %254 = sbr.rel (%p252) target = $region32
        $region31: #{tpu_custom_call.1} parent=27 // pred_region
          %s255 = sand.u32 %s52, 1
          %s256 = scalar_lea.sflag [#allocation7], %s255
          %s257 = sand.u32 %s52, 1
          %s258 = smul.addr %s257, 8
          %s259 = scalar_lea.vmem [#allocation6], %s258
          %261 = vsyncadd %s256, 0
          %s262 = sadd.s32 %s29, %s28
          %s263 = smul.addr %s262, 8
          %s264 = scalar_lea.hbm %s0, %s263
          %s266 = sshll.u32 %s264, 4
          %s267 = int_to_ptr.hbm [resolvable:$true] %s266
          %s268 = sshll.u32 %s259, 4
          %s269 = int_to_ptr.vmem [resolvable:$true] %s268
          %271 = dma.hbm_to_vmem [thread:$0]  %s267, 128, %s269, %s256
        $region32: #{tpu_custom_call.1} parent=27 // pred_fallthru
          _
        // Predicated region
        $region33: #{tpu_custom_call.1} parent=27 // pred_check
          %p272 = pneg %p94
        $region34: #{tpu_custom_call.1} parent=27 // pred_check_branch
          %274 = sbr.rel (%p272) target = $region36
        $region35: #{tpu_custom_call.1} parent=27 // pred_region
          %s275 = sand.u32 %s21, 1
          %s276 = scalar_lea.sflag [#allocation10], %s275
          %s277 = sand.u32 %s84, 1
          %s278 = smul.addr %s277, 8
          %s279 = scalar_lea.vmem [#allocation9], %s278
          %p280 = scmp.lt.s32.totalorder %s30, %s29
          %s281 = scalar_select %p280, %s30, %s29
          %283 = vsyncadd %s276, 0
          %s284 = sadd.s32 %s281, %s28
          %s285 = smul.addr %s284, 8
          %s286 = scalar_lea.hbm %s1, %s285
          %s288 = sshll.u32 %s286, 4
          %s289 = int_to_ptr.hbm [resolvable:$true] %s288
          %s290 = sshll.u32 %s279, 4
          %s291 = int_to_ptr.vmem [resolvable:$true] %s290
          %293 = dma.hbm_to_vmem [thread:$0]  %s289, 128, %s291, %s276
        $region36: #{tpu_custom_call.1} parent=27 // pred_fallthru
          _
      $region28: #{tpu_custom_call.1} parent=5 // pred_fallthru
        _
      %p294 = scmp.le.s32.totalorder 1, %s21
      %p295 = scmp.lt.s32.totalorder %s21, 3
      %p296 = pnand %p294, %p295
      %p297 = pneg %p296
      // Predicated region
      $region37: #{tpu_custom_call.1} parent=5 // pred_check
        _
      $region38: #{tpu_custom_call.1} parent=5 // pred_check_branch
        %299 = sbr.rel (%p296) target = $region40
      $region39: #{tpu_custom_call.1} parent=5 // pred_region
        %s300 = ssub.s32 %s21, 1
        %s301 = sand.u32 %s55, 1
        %s302 = scalar_lea.sflag [#allocation7], %s301
        %s303 = sand.u32 %s55, 1
        %s304 = smul.addr %s303, 8
        %s305 = scalar_lea.vmem [#allocation6], %s304
        // Predicated region
        $region41: #{tpu_custom_call.1} parent=39 // pred_check
          %p306 = pneg %p68
        $region42: #{tpu_custom_call.1} parent=39 // pred_check_branch
          %308 = sbr.rel (%p306) target = $region44
        $region43: #{tpu_custom_call.1} parent=39 // pred_region
          %310 = dma.done %s302, 128
        $region44: #{tpu_custom_call.1} parent=39 // pred_fallthru
          _
        %s311 = sand.u32 %s26, 1
        %s312 = scalar_lea.sflag [#allocation10], %s311
        %s313 = sand.u32 %s87, 1
        %s314 = smul.addr %s313, 8
        %s315 = scalar_lea.vmem [#allocation9], %s314
        // Predicated region
        $region45: #{tpu_custom_call.1} parent=39 // pred_check
          %p316 = pneg %p100
        $region46: #{tpu_custom_call.1} parent=39 // pred_check_branch
          %318 = sbr.rel (%p316) target = $region48
        $region47: #{tpu_custom_call.1} parent=39 // pred_region
          %320 = dma.done %s312, 128
        $region48: #{tpu_custom_call.1} parent=39 // pred_fallthru
          _
        // Predicated region
        $region49: #{tpu_custom_call.1} parent=39 // pred_check
          %p321 = pneg %p121
        $region50: #{tpu_custom_call.1} parent=39 // pred_check_branch
          %323 = sbr.rel (%p321) target = $region52
        $region51: #{tpu_custom_call.1} parent=39 // pred_region
          %325 = dma.done [#allocation10], 512
        $region52: #{tpu_custom_call.1} parent=39 // pred_fallthru
          _
        // Predicated region
        $region53: #{tpu_custom_call.1} parent=39 // pred_check
          %p326 = pneg %p142
        $region54: #{tpu_custom_call.1} parent=39 // pred_check_branch
          %328 = sbr.rel (%p326) target = $region56
        $region55: #{tpu_custom_call.1} parent=39 // pred_region
          %330 = dma.done [#allocation13], 512
        $region56: #{tpu_custom_call.1} parent=39 // pred_fallthru
          _
        // Predicated region
        $region57: #{tpu_custom_call.1} parent=39 // pred_check
          %p331 = pneg %p163
        $region58: #{tpu_custom_call.1} parent=39 // pred_check_branch
          %333 = sbr.rel (%p331) target = $region60
        $region59: #{tpu_custom_call.1} parent=39 // pred_region
          %335 = dma.done [#allocation13], 512
        $region60: #{tpu_custom_call.1} parent=39 // pred_fallthru
          _
        %s336 = sand.u32 %s55, 1
        %s337 = scalar_lea.sflag [#allocation7], %s336
        %s338 = sand.u32 %s55, 1
        %s339 = smul.addr %s338, 8
        %s340 = scalar_lea.vmem [#allocation6], %s339
        %p341 = pneg %p68
        %p342 = pneg %p65
        %s343 = sand.u32 %s26, 1
        %s344 = scalar_lea.sflag [#allocation10], %s343
        %s345 = sand.u32 %s87, 1
        %s346 = smul.addr %s345, 8
        %s347 = scalar_lea.vmem [#allocation9], %s346
        %p348 = pneg %p100
        %p349 = pneg %p97
        %p350 = pneg %p121
        %p351 = pneg %p118
        %p352 = pneg %p142
        %p353 = pneg %p139
        %p354 = pneg %p163
        %p355 = pneg %p160
        %p356 = pneg %p191
        %p357 = pneg %p188
        %s358 = sand.u32 %s178, 1
        %s359 = scalar_lea.sflag [#allocation8], %s358
        %s360 = sand.u32 %s178, 1
        %s361 = smul.addr %s360, 8
        %s362 = scalar_lea.vmem [#allocation15], %s361
        %p363 = scmp.lt.s32.totalorder %s33, %s32
        %s364 = scalar_select %p363, %s33, %s32
        %p365 = scmp.eq.s32.totalorder %s33, 0
        // Predicated region
        $region61: #{tpu_custom_call.1} parent=39 // pred_check
          %p366 = pneg %p365
        $region62: #{tpu_custom_call.1} parent=39 // pred_check_branch
          %368 = sbr.rel (%p366) target = $region64
        $region63: #{tpu_custom_call.1} parent=39 // pred_region
          %v369 = vld [vmem:[%s305] sm:$0xff]
          %v370 = vld [vmem:[#allocation11] sm:$0xff]
          %v371 = vld [vmem:[#allocation11 + $0x8] sm:$0xff]
          %v372 = vld [vmem:[#allocation11 + $0x10] sm:$0xff]
          %v373 = vld [vmem:[#allocation11 + $0x18] sm:$0xff]
          %vm374 = vcmask 261120
          %v376 = vsel %vm374, %v369, 0
          %378 = vmatpush.msra.mxu0 0.0
          %379 = vmatpush.msra.mxu0 0.0
          %380 = vmatpush.msra.mxu0 0.0
          %381 = vmatpush.msra.mxu0 0.0
          %382 = vmatpush.msra.mxu0 0.0
          %383 = vmatpush.msra.mxu0 0.0
          %384 = vmatpush.msra.mxu0 0.0
          %385 = vmatpush.msra.mxu0 0.0
          %386 = vmatpush.msra.mxu0 0.0
          %387 = vmatpush.msra.mxu0 0.0
          %388 = vmatpush.msra.mxu0 0.0
          %389 = vmatpush.msra.mxu0 0.0
          %390 = vmatpush.msra.mxu0 %v373
          %391 = vmatpush.msra.mxu0 %v372
          %392 = vmatpush.msra.mxu0 %v371
          %393 = vmatpush.msra.mxu0 %v370
          %394 = vmatmul.f32.gmra.mxu0 %v376
          %v395 = vpop.f32.mrf.mxu0
          %v396 = vadd.f32 0.0, %v395
          %397 = vdwg.mxu0
          %398 = vst.msk [vmem:[#allocation2] sm:$0xff] %vm374, %v396
          %vm399 = vcmask 31744
          %400 = vst.msk [vmem:[#allocation3] sm:$0xff] %vm399, -inf
          %401 = vst.msk [vmem:[#allocation4] sm:$0xff] %vm399, 0.0
          %402 = vst.msk [vmem:[#allocation5] sm:$0xff] %vm374, 0.0
        $region64: #{tpu_custom_call.1} parent=39 // pred_fallthru
          _
        %p403 = scmp.le.s32.totalorder %s33, %s32
        // Predicated region
        $region65: #{tpu_custom_call.1} parent=39 // pred_check
          %p404 = pneg %p403
        $region66: #{tpu_custom_call.1} parent=39 // pred_check_branch
          %406 = sbr.rel (%p404) target = $region68
        $region67: #{tpu_custom_call.1} parent=39 // pred_region
          %v407 = vld [vmem:[%s315] sm:$0xff]
          %v408 = vld [vmem:[#allocation12] sm:$0xff]
          %v409 = vld [vmem:[#allocation12 + $0x8] sm:$0xff]
          %v410 = vld [vmem:[#allocation12 + $0x10] sm:$0xff]
          %v411 = vld [vmem:[#allocation12 + $0x18] sm:$0xff]
          %vm412 = vcmask 261120
          %v414 = vsel %vm412, %v407, 0
          %416 = vmatpush.msra.mxu0 0.0
          %417 = vmatpush.msra.mxu0 0.0
          %418 = vmatpush.msra.mxu0 0.0
          %419 = vmatpush.msra.mxu0 0.0
          %420 = vmatpush.msra.mxu0 0.0
          %421 = vmatpush.msra.mxu0 0.0
          %422 = vmatpush.msra.mxu0 0.0
          %423 = vmatpush.msra.mxu0 0.0
          %424 = vmatpush.msra.mxu0 0.0
          %425 = vmatpush.msra.mxu0 0.0
          %426 = vmatpush.msra.mxu0 0.0
          %427 = vmatpush.msra.mxu0 0.0
          %428 = vmatpush.msra.mxu0 %v411
          %429 = vmatpush.msra.mxu0 %v410
          %430 = vmatpush.msra.mxu0 %v409
          %431 = vmatpush.msra.mxu0 %v408
          %432 = vmatmul.f32.gmra.mxu0 %v414
          %v433 = vpop.f32.mrf.mxu0
          %v434 = vadd.f32 0.0, %v433
          %435 = vdwg.mxu0
          %v436 = vlaneseq
          %v437 = vshrl.u32 %v436, 7
          %s438 = smul.u32 %s32, 8
          %v439 = vstv %s438
          %v440 = vadd.s32 %v437, %v439
          %v441 = vlaneseq
          %v442 = vand.u32 %v441, 127
          %s443 = smul.u32 %s33, 8
          %v444 = vstv %s443
          %v445 = vadd.s32 %v442, %v444
          %vm446 = vcmp.le.s32.totalorder %v445, %v440
          %v447 = vld [vmem:[#allocation2] sm:$0xff]
          %vm448 = vcmask 64512
          %v450 = vsel %vm448, %v447, 0
          %v453 = vsel %vm448, %v434, 0
          %455 = vmatpush.xpose.msra.mxu0 0.0
          %456 = vmatpush.xpose.msra.mxu0 0.0
          %457 = vmatpush.xpose.msra.mxu0 0.0
          %458 = vmatpush.xpose.msra.mxu0 0.0
          %459 = vmatpush.xpose.msra.mxu0 0.0
          %460 = vmatpush.xpose.msra.mxu0 0.0
          %461 = vmatpush.xpose.msra.mxu0 0.0
          %462 = vmatpush.xpose.msra.mxu0 0.0
          %463 = vmatpush.xpose.msra.mxu0 0.0
          %464 = vmatpush.xpose.msra.mxu0 0.0
          %465 = vmatpush.xpose.msra.mxu0 0.0
          %466 = vmatpush.xpose.msra.mxu0 0.0
          %467 = vmatpush.xpose.msra.mxu0 0.0
          %468 = vmatpush.xpose.msra.mxu0 0.0
          %469 = vmatpush.xpose.msra.mxu0 0.0
          %470 = vmatpush.xpose.msra.mxu0 %v453
          %471 = vmatmul.f32.gmra.mxu0 %v450
          %v472 = vpop.f32.mrf.mxu0
          %v473 = vadd.f32 0.0, %v472
          %474 = vdwg.mxu0
          %v475 = vsel %vm446, %v473, -inf
          %v476 = vld [vmem:[#allocation3] sm:$0xff]
          %v477 = vsel %vm448, %v475, -inf
          %478 = vmax.xlane.f32.xlu0 %v477
          %v479 = vpop.xlane.xlu0 %478
          %v480 = vmax.f32 %v476, %v479
          %v481 = vsub.f32 %v476, %v480
          %v482 = vmul.f32 %v481, 1.442695
          %v483 = vpow.pop %v482
          %485 = vset.pattern.permute.xlu0 0
          %486 = vperm.xlu0 %485, %v480
          %v487 = vpop.permute.xlu0 %486
          %v489 = vsub.f32 %v475, %v487
          %v490 = vmul.f32 %v489, 1.442695
          %v491 = vpow.pop %v490
          %v492 = vld [vmem:[#allocation4] sm:$0xff]
          %v493 = vmul.f32 %v483, %v492
          %v494 = vsel %vm448, %v491, 0.0
          %495 = vadd.xlane.f32.xlu0 %v494
          %v496 = vpop.xlane.xlu0 %495
          %v497 = vadd.f32 %v493, %v496
          %vm498 = vcmask 7168
          %499 = vst.msk [vmem:[#allocation4] sm:$0xff] %vm498, %v497
          %v500 = vld [vmem:[#allocation5] sm:$0xff]
          %502 = vset.pattern.permute.xlu0 0
          %503 = vperm.xlu0 %502, %v483
          %v504 = vpop.permute.xlu0 %503
          %v506 = vmul.f32 %v504, %v500
          %507 = vrot.lane.b32.xlu0 %v434, 96
          %v508 = vpop.permute.xlu0 %507
          %v511 = vsel %vm448, %v491, 0
          %513 = vmatpush.msra.mxu0 0.0
          %514 = vmatpush.msra.mxu0 0.0
          %515 = vmatpush.msra.mxu0 0.0
          %516 = vmatpush.msra.mxu0 0.0
          %517 = vmatpush.msra.mxu0 0.0
          %518 = vmatpush.msra.mxu0 0.0
          %519 = vmatpush.msra.mxu0 0.0
          %520 = vmatpush.msra.mxu0 0.0
          %521 = vmatpush.msra.mxu0 0.0
          %522 = vmatpush.msra.mxu0 0.0
          %523 = vmatpush.msra.mxu0 0.0
          %524 = vmatpush.msra.mxu0 0.0
          %525 = vmatpush.msra.mxu0 0.0
          %526 = vmatpush.msra.mxu0 0.0
          %527 = vmatpush.msra.mxu0 0.0
          %528 = vmatpush.msra.mxu0 %v508
          %529 = vmatmul.f32.gmra.mxu0 %v511
          %v530 = vpop.f32.mrf.mxu0
          %v531 = vadd.f32 0.0, %v530
          %532 = vdwg.mxu0
          %v533 = vadd.f32 %v506, %v531
          %534 = vst.msk [vmem:[#allocation5] sm:$0xff] %vm448, %v533
          %535 = vst.msk [vmem:[#allocation3] sm:$0xff] %vm498, %v480
          %v536 = vld [vmem:[#allocation2] sm:$0xff]
          %538 = vrot.lane.b32.xlu0 %v536, 120
          %v539 = vpop.permute.xlu0 %538
          %540 = vrot.lane.b32.xlu0 %v434, 120
          %v541 = vpop.permute.xlu0 %540
          %v542 = vsel %vm448, %v539, 0
          %v544 = vsel %vm448, %v541, 0
          %546 = vmatpush.xpose.msra.mxu0 0.0
          %547 = vmatpush.xpose.msra.mxu0 0.0
          %548 = vmatpush.xpose.msra.mxu0 0.0
          %549 = vmatpush.xpose.msra.mxu0 0.0
          %550 = vmatpush.xpose.msra.mxu0 0.0
          %551 = vmatpush.xpose.msra.mxu0 0.0
          %552 = vmatpush.xpose.msra.mxu0 0.0
          %553 = vmatpush.xpose.msra.mxu0 0.0
          %554 = vmatpush.xpose.msra.mxu0 0.0
          %555 = vmatpush.xpose.msra.mxu0 0.0
          %556 = vmatpush.xpose.msra.mxu0 0.0
          %557 = vmatpush.xpose.msra.mxu0 0.0
          %558 = vmatpush.xpose.msra.mxu0 0.0
          %559 = vmatpush.xpose.msra.mxu0 0.0
          %560 = vmatpush.xpose.msra.mxu0 0.0
          %561 = vmatpush.xpose.msra.mxu0 %v544
          %562 = vmatmul.f32.gmra.mxu0 %v542
          %v563 = vpop.f32.mrf.mxu0
          %v564 = vadd.f32 0.0, %v563
          %565 = vdwg.mxu0
          %v566 = vsel %vm446, %v564, -inf
          %v567 = vld [vmem:[#allocation3] sm:$0xff]
          %v568 = vsel %vm448, %v566, -inf
          %569 = vmax.xlane.f32.xlu0 %v568
          %v570 = vpop.xlane.xlu0 %569
          %v571 = vmax.f32 %v567, %v570
          %v572 = vsub.f32 %v567, %v571
          %v573 = vmul.f32 %v572, 1.442695
          %v574 = vpow.pop %v573
          %576 = vset.pattern.permute.xlu0 1
          %577 = vperm.xlu0 %576, %v571
          %v578 = vpop.permute.xlu0 %577
          %v580 = vsub.f32 %v566, %v578
          %v581 = vmul.f32 %v580, 1.442695
          %v582 = vpow.pop %v581
          %v583 = vld [vmem:[#allocation4] sm:$0xff]
          %v584 = vmul.f32 %v574, %v583
          %v585 = vsel %vm448, %v582, 0.0
          %586 = vadd.xlane.f32.xlu0 %v585
          %v587 = vpop.xlane.xlu0 %586
          %v588 = vadd.f32 %v584, %v587
          %vm589 = vcmask 15368
          %590 = vst.msk [vmem:[#allocation4] sm:$0xff] %vm589, %v588
          %v591 = vld [vmem:[#allocation5] sm:$0xff]
          %593 = vset.pattern.permute.xlu0 1
          %594 = vperm.xlu0 %593, %v574
          %v595 = vpop.permute.xlu0 %594
          %v597 = vmul.f32 %v595, %v591
          %598 = vrot.lane.b32.xlu0 %v434, 88
          %v599 = vpop.permute.xlu0 %598
          %v602 = vsel %vm448, %v582, 0
          %604 = vmatpush.msra.mxu0 0.0
          %605 = vmatpush.msra.mxu0 0.0
          %606 = vmatpush.msra.mxu0 0.0
          %607 = vmatpush.msra.mxu0 0.0
          %608 = vmatpush.msra.mxu0 0.0
          %609 = vmatpush.msra.mxu0 0.0
          %610 = vmatpush.msra.mxu0 0.0
          %611 = vmatpush.msra.mxu0 0.0
          %612 = vmatpush.msra.mxu0 0.0
          %613 = vmatpush.msra.mxu0 0.0
          %614 = vmatpush.msra.mxu0 0.0
          %615 = vmatpush.msra.mxu0 0.0
          %616 = vmatpush.msra.mxu0 0.0
          %617 = vmatpush.msra.mxu0 0.0
          %618 = vmatpush.msra.mxu0 0.0
          %619 = vmatpush.msra.mxu0 %v599
          %620 = vmatmul.f32.gmra.mxu0 %v602
          %v621 = vpop.f32.mrf.mxu0
          %v622 = vadd.f32 0.0, %v621
          %623 = vdwg.mxu0
          %625 = vrot.lane.b32.xlu0 %v622, 8
          %v626 = vpop.permute.xlu0 %625
          %v628 = vadd.f32 %v597, %v626
          %vm629 = vcmask 130112
          %630 = vst.msk [vmem:[#allocation5] sm:$0xff] %vm629, %v628
          %631 = vst.msk [vmem:[#allocation3] sm:$0xff] %vm589, %v571
          %v632 = vld [vmem:[#allocation2] sm:$0xff]
          %634 = vrot.lane.b32.xlu0 %v632, 112
          %v635 = vpop.permute.xlu0 %634
          %636 = vrot.lane.b32.xlu0 %v434, 112
          %v637 = vpop.permute.xlu0 %636
          %v638 = vsel %vm448, %v635, 0
          %v640 = vsel %vm448, %v637, 0
          %642 = vmatpush.xpose.msra.mxu0 0.0
          %643 = vmatpush.xpose.msra.mxu0 0.0
          %644 = vmatpush.xpose.msra.mxu0 0.0
          %645 = vmatpush.xpose.msra.mxu0 0.0
          %646 = vmatpush.xpose.msra.mxu0 0.0
          %647 = vmatpush.xpose.msra.mxu0 0.0
          %648 = vmatpush.xpose.msra.mxu0 0.0
          %649 = vmatpush.xpose.msra.mxu0 0.0
          %650 = vmatpush.xpose.msra.mxu0 0.0
          %651 = vmatpush.xpose.msra.mxu0 0.0
          %652 = vmatpush.xpose.msra.mxu0 0.0
          %653 = vmatpush.xpose.msra.mxu0 0.0
          %654 = vmatpush.xpose.msra.mxu0 0.0
          %655 = vmatpush.xpose.msra.mxu0 0.0
          %656 = vmatpush.xpose.msra.mxu0 0.0
          %657 = vmatpush.xpose.msra.mxu0 %v640
          %658 = vmatmul.f32.gmra.mxu0 %v638
          %v659 = vpop.f32.mrf.mxu0
          %v660 = vadd.f32 0.0, %v659
          %661 = vdwg.mxu0
          %v662 = vsel %vm446, %v660, -inf
          %v663 = vld [vmem:[#allocation3] sm:$0xff]
          %v664 = vsel %vm448, %v662, -inf
          %665 = vmax.xlane.f32.xlu0 %v664
          %v666 = vpop.xlane.xlu0 %665
          %v667 = vmax.f32 %v663, %v666
          %v668 = vsub.f32 %v663, %v667
          %v669 = vmul.f32 %v668, 1.442695
          %v670 = vpow.pop %v669
          %672 = vset.pattern.permute.xlu0 2
          %673 = vperm.xlu0 %672, %v667
          %v674 = vpop.permute.xlu0 %673
          %v676 = vsub.f32 %v662, %v674
          %v677 = vmul.f32 %v676, 1.442695
          %v678 = vpow.pop %v677
          %v679 = vld [vmem:[#allocation4] sm:$0xff]
          %v680 = vmul.f32 %v670, %v679
          %v681 = vsel %vm448, %v678, 0.0
          %682 = vadd.xlane.f32.xlu0 %v681
          %v683 = vpop.xlane.xlu0 %682
          %v684 = vadd.f32 %v680, %v683
          %vm685 = vcmask 23568
          %686 = vst.msk [vmem:[#allocation4] sm:$0xff] %vm685, %v684
          %v687 = vld [vmem:[#allocation5] sm:$0xff]
          %689 = vset.pattern.permute.xlu0 2
          %690 = vperm.xlu0 %689, %v670
          %v691 = vpop.permute.xlu0 %690
          %v693 = vmul.f32 %v691, %v687
          %694 = vrot.lane.b32.xlu0 %v434, 80
          %v695 = vpop.permute.xlu0 %694
          %v698 = vsel %vm448, %v678, 0
          %700 = vmatpush.msra.mxu0 0.0
          %701 = vmatpush.msra.mxu0 0.0
          %702 = vmatpush.msra.mxu0 0.0
          %703 = vmatpush.msra.mxu0 0.0
          %704 = vmatpush.msra.mxu0 0.0
          %705 = vmatpush.msra.mxu0 0.0
          %706 = vmatpush.msra.mxu0 0.0
          %707 = vmatpush.msra.mxu0 0.0
          %708 = vmatpush.msra.mxu0 0.0
          %709 = vmatpush.msra.mxu0 0.0
          %710 = vmatpush.msra.mxu0 0.0
          %711 = vmatpush.msra.mxu0 0.0
          %712 = vmatpush.msra.mxu0 0.0
          %713 = vmatpush.msra.mxu0 0.0
          %714 = vmatpush.msra.mxu0 0.0
          %715 = vmatpush.msra.mxu0 %v695
          %716 = vmatmul.f32.gmra.mxu0 %v698
          %v717 = vpop.f32.mrf.mxu0
          %v718 = vadd.f32 0.0, %v717
          %719 = vdwg.mxu0
          %721 = vrot.lane.b32.xlu0 %v718, 16
          %v722 = vpop.permute.xlu0 %721
          %v724 = vadd.f32 %v693, %v722
          %vm725 = vcmask 195712
          %726 = vst.msk [vmem:[#allocation5] sm:$0xff] %vm725, %v724
          %727 = vst.msk [vmem:[#allocation3] sm:$0xff] %vm685, %v667
          %v728 = vld [vmem:[#allocation2] sm:$0xff]
          %730 = vrot.lane.b32.xlu0 %v728, 104
          %v731 = vpop.permute.xlu0 %730
          %732 = vrot.lane.b32.xlu0 %v434, 104
          %v733 = vpop.permute.xlu0 %732
          %v734 = vsel %vm448, %v731, 0
          %v736 = vsel %vm448, %v733, 0
          %738 = vmatpush.xpose.msra.mxu0 0.0
          %739 = vmatpush.xpose.msra.mxu0 0.0
          %740 = vmatpush.xpose.msra.mxu0 0.0
          %741 = vmatpush.xpose.msra.mxu0 0.0
          %742 = vmatpush.xpose.msra.mxu0 0.0
          %743 = vmatpush.xpose.msra.mxu0 0.0
          %744 = vmatpush.xpose.msra.mxu0 0.0
          %745 = vmatpush.xpose.msra.mxu0 0.0
          %746 = vmatpush.xpose.msra.mxu0 0.0
          %747 = vmatpush.xpose.msra.mxu0 0.0
          %748 = vmatpush.xpose.msra.mxu0 0.0
          %749 = vmatpush.xpose.msra.mxu0 0.0
          %750 = vmatpush.xpose.msra.mxu0 0.0
          %751 = vmatpush.xpose.msra.mxu0 0.0
          %752 = vmatpush.xpose.msra.mxu0 0.0
          %753 = vmatpush.xpose.msra.mxu0 %v736
          %754 = vmatmul.f32.gmra.mxu0 %v734
          %v755 = vpop.f32.mrf.mxu0
          %v756 = vadd.f32 0.0, %v755
          %757 = vdwg.mxu0
          %v758 = vsel %vm446, %v756, -inf
          %v759 = vld [vmem:[#allocation3] sm:$0xff]
          %v760 = vsel %vm448, %v758, -inf
          %761 = vmax.xlane.f32.xlu0 %v760
          %v762 = vpop.xlane.xlu0 %761
          %v763 = vmax.f32 %v759, %v762
          %v764 = vsub.f32 %v759, %v763
          %v765 = vmul.f32 %v764, 1.442695
          %v766 = vpow.pop %v765
          %768 = vset.pattern.permute.xlu0 3
          %769 = vperm.xlu0 %768, %v763
          %v770 = vpop.permute.xlu0 %769
          %v772 = vsub.f32 %v758, %v770
          %v773 = vmul.f32 %v772, 1.442695
          %v774 = vpow.pop %v773
          %v775 = vld [vmem:[#allocation4] sm:$0xff]
          %v776 = vmul.f32 %v766, %v775
          %v777 = vsel %vm448, %v774, 0.0
          %778 = vadd.xlane.f32.xlu0 %v777
          %v779 = vpop.xlane.xlu0 %778
          %v780 = vadd.f32 %v776, %v779
          %vm781 = vcmask 31768
          %782 = vst.msk [vmem:[#allocation4] sm:$0xff] %vm781, %v780
          %v783 = vld [vmem:[#allocation5] sm:$0xff]
          %785 = vset.pattern.permute.xlu0 3
          %786 = vperm.xlu0 %785, %v766
          %v787 = vpop.permute.xlu0 %786
          %v789 = vmul.f32 %v787, %v783
          %790 = vrot.lane.b32.xlu0 %v434, 72
          %v791 = vpop.permute.xlu0 %790
          %v794 = vsel %vm448, %v774, 0
          %796 = vmatpush.msra.mxu0 0.0
          %797 = vmatpush.msra.mxu0 0.0
          %798 = vmatpush.msra.mxu0 0.0
          %799 = vmatpush.msra.mxu0 0.0
          %800 = vmatpush.msra.mxu0 0.0
          %801 = vmatpush.msra.mxu0 0.0
          %802 = vmatpush.msra.mxu0 0.0
          %803 = vmatpush.msra.mxu0 0.0
          %804 = vmatpush.msra.mxu0 0.0
          %805 = vmatpush.msra.mxu0 0.0
          %806 = vmatpush.msra.mxu0 0.0
          %807 = vmatpush.msra.mxu0 0.0
          %808 = vmatpush.msra.mxu0 0.0
          %809 = vmatpush.msra.mxu0 0.0
          %810 = vmatpush.msra.mxu0 0.0
          %811 = vmatpush.msra.mxu0 %v791
          %812 = vmatmul.f32.gmra.mxu0 %v794
          %v813 = vpop.f32.mrf.mxu0
          %v814 = vadd.f32 0.0, %v813
          %815 = vdwg.mxu0
          %817 = vrot.lane.b32.xlu0 %v814, 24
          %v818 = vpop.permute.xlu0 %817
          %v820 = vadd.f32 %v789, %v818
          %vm821 = vcmask 261312
          %822 = vst.msk [vmem:[#allocation5] sm:$0xff] %vm821, %v820
          %823 = vst.msk [vmem:[#allocation3] sm:$0xff] %vm781, %v763
        $region68: #{tpu_custom_call.1} parent=39 // pred_fallthru
          _
        %p824 = scmp.eq.s32.totalorder %s33, %s32
        // Predicated region
        $region69: #{tpu_custom_call.1} parent=39 // pred_check
          %p825 = pneg %p824
        $region70: #{tpu_custom_call.1} parent=39 // pred_check_branch
          %827 = sbr.rel (%p825) target = $region72
        $region71: #{tpu_custom_call.1} parent=39 // pred_region
          %v828 = vld [vmem:[#allocation4] sm:$0xff]
          %v829 = vrcp.pop %v828
          %v830 = vmul.f32 %v828, %v829
          %v831 = vsub.f32 2.0, %v830
          %v832 = vmul.f32 %v829, %v831
          %v833 = vld [vmem:[#allocation5] sm:$0xff]
          %835 = vset.pattern.permute.xlu0 0
          %836 = vperm.xlu0 %835, %v832
          %v837 = vpop.permute.xlu0 %836
          %v839 = vmul.f32 %v833, %v837
          %vm840 = vcmask 64512
          %841 = vst.msk [vmem:[#allocation5] sm:$0xff] %vm840, %v839
          %v842 = vld [vmem:[#allocation4] sm:$0xff]
          %v843 = vrcp.pop %v842
          %v844 = vmul.f32 %v842, %v843
          %v845 = vsub.f32 2.0, %v844
          %v846 = vmul.f32 %v843, %v845
          %v847 = vld [vmem:[#allocation5] sm:$0xff]
          %849 = vset.pattern.permute.xlu0 1
          %850 = vperm.xlu0 %849, %v846
          %v851 = vpop.permute.xlu0 %850
          %v853 = vmul.f32 %v847, %v851
          %vm854 = vcmask 130112
          %855 = vst.msk [vmem:[#allocation5] sm:$0xff] %vm854, %v853
          %v856 = vld [vmem:[#allocation4] sm:$0xff]
          %v857 = vrcp.pop %v856
          %v858 = vmul.f32 %v856, %v857
          %v859 = vsub.f32 2.0, %v858
          %v860 = vmul.f32 %v857, %v859
          %v861 = vld [vmem:[#allocation5] sm:$0xff]
          %863 = vset.pattern.permute.xlu0 2
          %864 = vperm.xlu0 %863, %v860
          %v865 = vpop.permute.xlu0 %864
          %v867 = vmul.f32 %v861, %v865
          %vm868 = vcmask 195712
          %869 = vst.msk [vmem:[#allocation5] sm:$0xff] %vm868, %v867
          %v870 = vld [vmem:[#allocation4] sm:$0xff]
          %v871 = vrcp.pop %v870
          %v872 = vmul.f32 %v870, %v871
          %v873 = vsub.f32 2.0, %v872
          %v874 = vmul.f32 %v871, %v873
          %v875 = vld [vmem:[#allocation5] sm:$0xff]
          %877 = vset.pattern.permute.xlu0 3
          %878 = vperm.xlu0 %877, %v874
          %v879 = vpop.permute.xlu0 %878
          %v881 = vmul.f32 %v875, %v879
          %vm882 = vcmask 261312
          %883 = vst.msk [vmem:[#allocation5] sm:$0xff] %vm882, %v881
          %v884 = vld [vmem:[#allocation5] sm:$0xff]
          %v885 = vld [vmem:[#allocation14] sm:$0xff]
          %v886 = vld [vmem:[#allocation14 + $0x8] sm:$0xff]
          %v887 = vld [vmem:[#allocation14 + $0x10] sm:$0xff]
          %v888 = vld [vmem:[#allocation14 + $0x18] sm:$0xff]
          %vm889 = vcmask 261120
          %v891 = vsel %vm889, %v884, 0
          %893 = vmatpush.msra.mxu0 0.0
          %894 = vmatpush.msra.mxu0 0.0
          %895 = vmatpush.msra.mxu0 0.0
          %896 = vmatpush.msra.mxu0 0.0
          %897 = vmatpush.msra.mxu0 0.0
          %898 = vmatpush.msra.mxu0 0.0
          %899 = vmatpush.msra.mxu0 0.0
          %900 = vmatpush.msra.mxu0 0.0
          %901 = vmatpush.msra.mxu0 0.0
          %902 = vmatpush.msra.mxu0 0.0
          %903 = vmatpush.msra.mxu0 0.0
          %904 = vmatpush.msra.mxu0 0.0
          %905 = vmatpush.msra.mxu0 %v888
          %906 = vmatpush.msra.mxu0 %v887
          %907 = vmatpush.msra.mxu0 %v886
          %908 = vmatpush.msra.mxu0 %v885
          %909 = vmatmul.f32.gmra.mxu0 %v891
          %v910 = vpop.f32.mrf.mxu0
          %v911 = vadd.f32 0.0, %v910
          %912 = vdwg.mxu0
          %913 = vst.msk [vmem:[%s362] sm:$0xff] %vm889, %v911
        $region72: #{tpu_custom_call.1} parent=39 // pred_fallthru
          _
        %s914 = sand.u32 %s178, 1
        %s915 = scalar_lea.sflag [#allocation8], %s914
        %s916 = sand.u32 %s178, 1
        %s917 = smul.addr %s916, 8
        %s918 = scalar_lea.vmem [#allocation15], %s917
        // Predicated region
        $region73: #{tpu_custom_call.1} parent=39 // pred_check
          %p919 = pneg %p188
        $region74: #{tpu_custom_call.1} parent=39 // pred_check_branch
          %921 = sbr.rel (%p919) target = $region76
        $region75: #{tpu_custom_call.1} parent=39 // pred_region
          %923 = vsyncadd %s915, 0
          %s924 = sadd.s32 %s32, %s31
          %s925 = smul.addr %s924, 8
          %s926 = scalar_lea.hbm %s5, %s925
          %s928 = sshll.u32 %s918, 4
          %s929 = int_to_ptr.vmem [resolvable:$true] %s928
          %s930 = sshll.u32 %s926, 4
          %s931 = int_to_ptr.hbm [resolvable:$true] %s930
          %933 = dma.vmem_to_hbm [thread:$0]  %s929, 128, %s931, %s915
        $region76: #{tpu_custom_call.1} parent=39 // pred_fallthru
          _
      $region40: #{tpu_custom_call.1} parent=5 // pred_fallthru
        _
      %p934 = scmp.le.s32.totalorder 2, %s21
      // Predicated region
      $region77: #{tpu_custom_call.1} parent=5 // pred_check
        %p935 = pneg %p934
      $region78: #{tpu_custom_call.1} parent=5 // pred_check_branch
        %937 = sbr.rel (%p935) target = $region80
      $region79: #{tpu_custom_call.1} parent=5 // pred_region
        %s938 = ssub.s32 %s21, 2
        // Predicated region
        $region81: #{tpu_custom_call.1} parent=79 // pred_check
          %p939 = pneg %p194
        $region82: #{tpu_custom_call.1} parent=79 // pred_check_branch
          %941 = sbr.rel (%p939) target = $region84
        $region83: #{tpu_custom_call.1} parent=79 // pred_region
          %s942 = sand.u32 %s179, 1
          %s943 = scalar_lea.sflag [#allocation8], %s942
          %s944 = sand.u32 %s179, 1
          %s945 = smul.addr %s944, 8
          %s946 = scalar_lea.vmem [#allocation15], %s945
          %948 = dma.done %s943, 128
        $region84: #{tpu_custom_call.1} parent=79 // pred_fallthru
          _
      $region80: #{tpu_custom_call.1} parent=5 // pred_fallthru
        _
    $region6: #{tpu_custom_call.1} parent=1 // loop_footer
      %s25 = sadd.s32 1, %s21
    $region7: #{tpu_custom_call.1} parent=1 // loop_footer_branch
      %20 = sbr.rel target = $region3
    $region8: #{tpu_custom_call.1} parent=1 // loop_exit
      _
    %949 = vsyncpa [#allocation7], 1
    %s950 = scalar_lea.sflag [#allocation7], 1
    %951 = vsyncpa %s950, 1
    %952 = vsyncpa [#allocation10], 1
    %s953 = scalar_lea.sflag [#allocation10], 1
    %954 = vsyncpa %s953, 1
    %955 = vsyncpa [#allocation13], 1
    %956 = vsyncpa [#allocation8], 1
    %s957 = scalar_lea.sflag [#allocation8], 1
    %958 = vsyncpa %s957, 1

</llo_original>
